<compile_context>
chip_gen: v6e
topology: v6e:2x2x1
jax: 0.10.0
libtpu: 0.0.40
codegen_flags: <defaults>
</compile_context>

<pallas_src>
import jax
import jax.numpy as jnp
import numpy as np
from jax import lax
from jax.experimental import pallas as pl
from jax.experimental.pallas import tpu as pltpu


# ----------------------------- Pallas kernel ------------------------------- #
def decoder_rnn_kernel(tok_ref, emb_ref, h0_ref, w_ih_ref, w_hh_ref, b_ref,
                       wo_ref, bo_ref, out_ref, xbuf_ref):
    """Fused embedding + ReLU + multi-layer tanh RNN + output Linear.

    All shapes are padded to vreg tiles (Bp = 8 sublanes, Hp/V1p = 128 lanes).

    tok_ref : (S*Bp, 1)   int32 token ids, timestep-major, batch-padded
    emb_ref : (V1p, Hp)   embedding table, vocab & hidden zero-padded
    h0_ref  : (L, Bp, Hp) initial hidden per layer (encoder_hidden), padded
    w_ih_ref: (L, Hp, Hp) input->hidden weights, pre-transposed (in, out)
    w_hh_ref: (L, Hp, Hp) hidden->hidden weights, pre-transposed (in, out)
    b_ref   : (L, 1, Hp)  b_ih + b_hh (pre-summed in wrapper), padded
    wo_ref  : (Hp, V1p)   output Linear weight, pre-transposed, padded
    bo_ref  : (1, V1p)    output Linear bias, padded
    out_ref : (Bp, V1p)   padded logits
    xbuf_ref: (S, Bp, Hp) VMEM scratch: a layer's per-step outputs
    """
    SBp = tok_ref.shape[0]
    V1p = emb_ref.shape[0]
    L, Bp, Hp = h0_ref.shape
    S = SBp // Bp

    # Fused embedding lookup as a lane-dense one-hot matmul (MXU) + ReLU.
    tok = tok_ref[...]                                              # (S*Bp, 1)
    onehot = (tok == lax.broadcasted_iota(jnp.int32, (SBp, V1p), 1)
              ).astype(jnp.float32)                                 # (S*Bp, V1p)
    x = jnp.dot(onehot, emb_ref[...],
                preferred_element_type=jnp.float32)                 # (S*Bp, Hp)
    x = jnp.maximum(x, 0.0)                                         # ReLU

    h = None
    for l in range(L):                        # static unroll: L is tiny
        # Hoisted whole-layer input projection (+ pre-summed bias): one batched
        # matmul per layer; only h @ W_hh + tanh stays on the serial path.
        xin = (jnp.dot(x, w_ih_ref[l], preferred_element_type=jnp.float32)
               + b_ref[l])                                          # (S*Bp, Hp)
        w_hh = w_hh_ref[l]                                          # (Hp, Hp)
        h = h0_ref[l]                                               # (Bp, Hp)
        last_layer = (l == L - 1)
        for t in range(S):                    # static unroll: S is tiny
            # xin[t*Bp:(t+1)*Bp] is an aligned (8, 128) tile (Bp = 8).
            h = jnp.tanh(xin[t * Bp:(t + 1) * Bp, :]
                         + jnp.dot(h, w_hh,
                                   preferred_element_type=jnp.float32))
            if not last_layer:
                xbuf_ref[t] = h               # aligned full-tile store
        if not last_layer:
            # Layer-l outputs (timestep-major) feed layer l+1's hoisted
            # projection; collapsing (S, Bp, Hp) -> (S*Bp, Hp) is layout-free.
            x = xbuf_ref[...].reshape(SBp, Hp)

    # logits = last layer's final hidden @ Wo + bo (lane-dense padded store).
    out_ref[...] = (jnp.dot(h, wo_ref[...], preferred_element_type=jnp.float32)
                    + bo_ref[...])


# ------------------------------ JAX wrapper -------------------------------- #
def _round_up(n, m):
    return ((n + m - 1) // m) * m


@jax.jit
def decoder_rnn_forward(tokens, encoder_hidden, params):
    """tokens: (B, S) int32, encoder_hidden: (L, B, H) f32 -> logits (B, V+1)."""
    B, S = tokens.shape
    L, _, H = encoder_hidden.shape
    V1 = params["wo"].shape[1]

    Bp = _round_up(max(B, 8), 8)             # sublane-dense batch
    Hp = _round_up(H, 128)                   # lane-dense hidden
    V1p = _round_up(V1, 128)                 # lane-dense vocab

    # torch: emb(B,S,H) -> reshape((S,B,H)) is a flat reinterpretation, so the
    # timestep-major (S, B) token matrix is just tokens.reshape(S, B).
    tok_sm = tokens.reshape(S, B).astype(jnp.int32)
    tok_p = jnp.pad(tok_sm, ((0, 0), (0, Bp - B)))       # padded rows -> id 0
    tok_p = tok_p.reshape(S * Bp, 1)

    emb_p = jnp.pad(params["embedding"].astype(jnp.float32),
                    ((0, V1p - V1), (0, Hp - H)))                    # (V1p, Hp)
    w_ih_p = jnp.pad(params["w_ih"].astype(jnp.float32),
                     ((0, 0), (0, Hp - H), (0, Hp - H)))             # (L, Hp, Hp)
    w_hh_p = jnp.pad(params["w_hh"].astype(jnp.float32),
                     ((0, 0), (0, Hp - H), (0, Hp - H)))             # (L, Hp, Hp)
    b_p = jnp.pad((params["b_ih"] + params["b_hh"]).astype(jnp.float32),
                  ((0, 0), (0, 0), (0, Hp - H)))                     # (L, 1, Hp)
    wo_p = jnp.pad(params["wo"].astype(jnp.float32),
                   ((0, Hp - H), (0, V1p - V1)))                     # (Hp, V1p)
    bo_p = jnp.pad(params["bo"].astype(jnp.float32),
                   ((0, 0), (0, V1p - V1)))                          # (1, V1p)
    h0_p = jnp.pad(encoder_hidden.astype(jnp.float32),
                   ((0, 0), (0, Bp - B), (0, Hp - H)))               # (L, Bp, Hp)

    vmem = pl.BlockSpec(memory_space=pltpu.MemorySpace.VMEM)
    logits_p = pl.pallas_call(
        decoder_rnn_kernel,
        out_shape=jax.ShapeDtypeStruct((Bp, V1p), jnp.float32),
        in_specs=[vmem] * 8,
        out_specs=vmem,
        scratch_shapes=[pltpu.VMEM((S, Bp, Hp), jnp.float32)],
    )(tok_p, emb_p, h0_p, w_ih_p, w_hh_p, b_p, wo_p, bo_p)
    return logits_p[:B, :V1]


# --------------------------- pure-JAX reference ----------------------------- #
def decoder_rnn_reference(tokens, encoder_hidden, params):
    emb = jnp.take(params["embedding"], tokens, axis=0)             # (B, S, H)
    x = jnp.maximum(jnp.reshape(emb, (emb.shape[1], emb.shape[0], -1)), 0.0)
    L = encoder_hidden.shape[0]
    layer_in = x
    h = None
    for l in range(L):
        h = encoder_hidden[l]
        outs = []
        for t in range(layer_in.shape[0]):
            h = jnp.tanh(layer_in[t] @ params["w_ih"][l] + params["b_ih"][l]
                         + h @ params["w_hh"][l] + params["b_hh"][l])
            outs.append(h)
        layer_in = jnp.stack(outs, axis=0)
    return h @ params["wo"] + params["bo"]


# --------------------------------- main ------------------------------------ #
if __name__ == "__main__":
    # Small shapes consistent with the module.
    B, S = 2, 8                 # batch, sequence length
    H = 32                      # decoder_hidden_size
    L = 2                       # encoder_rnn_layers (num RNN layers)
    vocab_size = 50
    V1 = vocab_size + 1

    key = jax.random.PRNGKey(0)
    keys = jax.random.split(key, 10)
    bound = 1.0 / np.sqrt(H)

    params = {
        "embedding": jax.random.normal(keys[0], (V1, H), jnp.float32) * 0.1,
        # RNN weights stored pre-transposed as (in, out).
        "w_ih": jax.random.uniform(keys[1], (L, H, H), jnp.float32, -bound, bound),
        "w_hh": jax.random.uniform(keys[2], (L, H, H), jnp.float32, -bound, bound),
        "b_ih": jax.random.uniform(keys[3], (L, 1, H), jnp.float32, -bound, bound),
        "b_hh": jax.random.uniform(keys[4], (L, 1, H), jnp.float32, -bound, bound),
        # Output Linear, pre-transposed to (H, V+1).
        "wo":   jax.random.uniform(keys[5], (H, V1), jnp.float32, -bound, bound),
        "bo":   jax.random.uniform(keys[6], (1, V1), jnp.float32, -bound, bound),
    }

    tokens = jax.random.randint(keys[7], (B, S), 0, V1, dtype=jnp.int32)
    encoder_hidden = jax.random.normal(keys[8], (L, B, H), jnp.float32)

    logits = decoder_rnn_forward(tokens, encoder_hidden, params)
    logits = jax.block_until_ready(logits)

    ref = decoder_rnn_reference(tokens, encoder_hidden, params)
    np.testing.assert_allclose(np.asarray(logits), np.asarray(ref),
                               rtol=1e-5, atol=1e-5)
    assert logits.shape == (B, V1)
    print("KERNEL_OK")
</pallas_src>

<mosaic_0001>
module attributes {stable_mosaic.version = 11 : i64} {
  func.func @decoder_rnn_kernel(%arg0: memref<64x1xi32, #tpu.memory_space<vmem>>, %arg1: memref<128x128xf32, #tpu.memory_space<vmem>>, %arg2: memref<2x8x128xf32, #tpu.memory_space<vmem>>, %arg3: memref<2x128x128xf32, #tpu.memory_space<vmem>>, %arg4: memref<2x128x128xf32, #tpu.memory_space<vmem>>, %arg5: memref<2x1x128xf32, #tpu.memory_space<vmem>>, %arg6: memref<128x128xf32, #tpu.memory_space<vmem>>, %arg7: memref<1x128xf32, #tpu.memory_space<vmem>>, %arg8: memref<8x128xf32, #tpu.memory_space<vmem>>, %arg9: memref<8x8x128xf32, #tpu.memory_space<vmem>>) attributes {dimension_semantics = [], scalar_prefetch = 0 : i64, scratch_operands = 1 : i64, tpu.core_type = #tpu.core_type<tc>} {
    %c0 = arith.constant 0 : index
    %c0_0 = arith.constant 0 : index
    %0 = vector.load %arg0[%c0, %c0_0] : memref<64x1xi32, #tpu.memory_space<vmem>>, vector<64x1xi32>
    %1 = tpu.iota {dimensions = array<i32: 1>} : vector<64x128xi32>
    %2 = vector.broadcast %0 : vector<64x1xi32> to vector<64x128xi32>
    %3 = arith.cmpi eq, %2, %1 : vector<64x128xi32>
    %4 = arith.extui %3 : vector<64x128xi1> to vector<64x128xi32>
    %5 = arith.sitofp %4 : vector<64x128xi32> to vector<64x128xf32>
    %c0_1 = arith.constant 0 : index
    %c0_2 = arith.constant 0 : index
    %6 = vector.load %arg1[%c0_1, %c0_2] : memref<128x128xf32, #tpu.memory_space<vmem>>, vector<128x128xf32>
    %cst = arith.constant dense<0.000000e+00> : vector<64x128xf32>
    %7 = tpu.matmul %5, %6, %cst {dimension_numbers = #tpu.dot_dimension_numbers<[1], [0], [0], [1], [0, 0, 1, 1], [], []>} : vector<64x128xf32>, vector<128x128xf32>, vector<64x128xf32> -> vector<64x128xf32>
    %cst_3 = arith.constant 0.000000e+00 : f32
    %8 = vector.broadcast %cst_3 : f32 to vector<64x128xf32>
    %9 = arith.maximumf %7, %8 : vector<64x128xf32>
    %c0_4 = arith.constant 0 : index
    %c0_5 = arith.constant 0 : index
    %c0_6 = arith.constant 0 : index
    %10 = vector.load %arg3[%c0_4, %c0_5, %c0_6] : memref<2x128x128xf32, #tpu.memory_space<vmem>>, vector<1x128x128xf32>
    %11 = vector.shape_cast %10 : vector<1x128x128xf32> to vector<128x128xf32>
    %cst_7 = arith.constant dense<0.000000e+00> : vector<64x128xf32>
    %12 = tpu.matmul %9, %11, %cst_7 {dimension_numbers = #tpu.dot_dimension_numbers<[1], [0], [0], [1], [0, 0, 1, 1], [], []>} : vector<64x128xf32>, vector<128x128xf32>, vector<64x128xf32> -> vector<64x128xf32>
    %c0_8 = arith.constant 0 : index
    %c0_9 = arith.constant 0 : index
    %c0_10 = arith.constant 0 : index
    %13 = vector.load %arg5[%c0_8, %c0_9, %c0_10] : memref<2x1x128xf32, #tpu.memory_space<vmem>>, vector<1x1x128xf32>
    %14 = vector.shape_cast %13 : vector<1x1x128xf32> to vector<1x128xf32>
    %15 = vector.broadcast %14 : vector<1x128xf32> to vector<64x128xf32>
    %16 = arith.addf %12, %15 : vector<64x128xf32>
    %c0_11 = arith.constant 0 : index
    %c0_12 = arith.constant 0 : index
    %c0_13 = arith.constant 0 : index
    %17 = vector.load %arg4[%c0_11, %c0_12, %c0_13] : memref<2x128x128xf32, #tpu.memory_space<vmem>>, vector<1x128x128xf32>
    %18 = vector.shape_cast %17 : vector<1x128x128xf32> to vector<128x128xf32>
    %c0_14 = arith.constant 0 : index
    %c0_15 = arith.constant 0 : index
    %c0_16 = arith.constant 0 : index
    %19 = vector.load %arg2[%c0_14, %c0_15, %c0_16] : memref<2x8x128xf32, #tpu.memory_space<vmem>>, vector<1x8x128xf32>
    %20 = vector.shape_cast %19 : vector<1x8x128xf32> to vector<8x128xf32>
    %21 = vector.extract_strided_slice %16 {offsets = [0, 0], sizes = [8, 128], strides = [1, 1]} : vector<64x128xf32> to vector<8x128xf32>
    %cst_17 = arith.constant dense<0.000000e+00> : vector<8x128xf32>
    %22 = tpu.matmul %20, %18, %cst_17 {dimension_numbers = #tpu.dot_dimension_numbers<[1], [0], [0], [1], [0, 0, 1, 1], [], []>} : vector<8x128xf32>, vector<128x128xf32>, vector<8x128xf32> -> vector<8x128xf32>
    %23 = arith.addf %21, %22 : vector<8x128xf32>
    %24 = math.tanh %23 : vector<8x128xf32>
    %c0_18 = arith.constant 0 : index
    %c0_19 = arith.constant 0 : index
    %c0_20 = arith.constant 0 : index
    %25 = vector.load %arg9[%c0_18, %c0_19, %c0_20] : memref<8x8x128xf32, #tpu.memory_space<vmem>>, vector<1x8x128xf32>
    %26 = vector.shape_cast %25 : vector<1x8x128xf32> to vector<8x128xf32>
    %27 = vector.shape_cast %24 : vector<8x128xf32> to vector<1x8x128xf32>
    tpu.vector_store %arg9[%c0_18, %c0_19, %c0_20], %27 {strides = array<i32>} : memref<8x8x128xf32, #tpu.memory_space<vmem>>, vector<1x8x128xf32>,
    %28 = vector.extract_strided_slice %16 {offsets = [8, 0], sizes = [8, 128], strides = [1, 1]} : vector<64x128xf32> to vector<8x128xf32>
    %cst_21 = arith.constant dense<0.000000e+00> : vector<8x128xf32>
    %29 = tpu.matmul %24, %18, %cst_21 {dimension_numbers = #tpu.dot_dimension_numbers<[1], [0], [0], [1], [0, 0, 1, 1], [], []>} : vector<8x128xf32>, vector<128x128xf32>, vector<8x128xf32> -> vector<8x128xf32>
    %30 = arith.addf %28, %29 : vector<8x128xf32>
    %31 = math.tanh %30 : vector<8x128xf32>
    %c1 = arith.constant 1 : index
    %c0_22 = arith.constant 0 : index
    %c0_23 = arith.constant 0 : index
    %32 = vector.load %arg9[%c1, %c0_22, %c0_23] : memref<8x8x128xf32, #tpu.memory_space<vmem>>, vector<1x8x128xf32>
    %33 = vector.shape_cast %32 : vector<1x8x128xf32> to vector<8x128xf32>
    %34 = vector.shape_cast %31 : vector<8x128xf32> to vector<1x8x128xf32>
    tpu.vector_store %arg9[%c1, %c0_22, %c0_23], %34 {strides = array<i32>} : memref<8x8x128xf32, #tpu.memory_space<vmem>>, vector<1x8x128xf32>,
    %35 = vector.extract_strided_slice %16 {offsets = [16, 0], sizes = [8, 128], strides = [1, 1]} : vector<64x128xf32> to vector<8x128xf32>
    %cst_24 = arith.constant dense<0.000000e+00> : vector<8x128xf32>
    %36 = tpu.matmul %31, %18, %cst_24 {dimension_numbers = #tpu.dot_dimension_numbers<[1], [0], [0], [1], [0, 0, 1, 1], [], []>} : vector<8x128xf32>, vector<128x128xf32>, vector<8x128xf32> -> vector<8x128xf32>
    %37 = arith.addf %35, %36 : vector<8x128xf32>
    %38 = math.tanh %37 : vector<8x128xf32>
    %c2 = arith.constant 2 : index
    %c0_25 = arith.constant 0 : index
    %c0_26 = arith.constant 0 : index
    %39 = vector.load %arg9[%c2, %c0_25, %c0_26] : memref<8x8x128xf32, #tpu.memory_space<vmem>>, vector<1x8x128xf32>
    %40 = vector.shape_cast %39 : vector<1x8x128xf32> to vector<8x128xf32>
    %41 = vector.shape_cast %38 : vector<8x128xf32> to vector<1x8x128xf32>
    tpu.vector_store %arg9[%c2, %c0_25, %c0_26], %41 {strides = array<i32>} : memref<8x8x128xf32, #tpu.memory_space<vmem>>, vector<1x8x128xf32>,
    %42 = vector.extract_strided_slice %16 {offsets = [24, 0], sizes = [8, 128], strides = [1, 1]} : vector<64x128xf32> to vector<8x128xf32>
    %cst_27 = arith.constant dense<0.000000e+00> : vector<8x128xf32>
    %43 = tpu.matmul %38, %18, %cst_27 {dimension_numbers = #tpu.dot_dimension_numbers<[1], [0], [0], [1], [0, 0, 1, 1], [], []>} : vector<8x128xf32>, vector<128x128xf32>, vector<8x128xf32> -> vector<8x128xf32>
    %44 = arith.addf %42, %43 : vector<8x128xf32>
    %45 = math.tanh %44 : vector<8x128xf32>
    %c3 = arith.constant 3 : index
    %c0_28 = arith.constant 0 : index
    %c0_29 = arith.constant 0 : index
    %46 = vector.load %arg9[%c3, %c0_28, %c0_29] : memref<8x8x128xf32, #tpu.memory_space<vmem>>, vector<1x8x128xf32>
    %47 = vector.shape_cast %46 : vector<1x8x128xf32> to vector<8x128xf32>
    %48 = vector.shape_cast %45 : vector<8x128xf32> to vector<1x8x128xf32>
    tpu.vector_store %arg9[%c3, %c0_28, %c0_29], %48 {strides = array<i32>} : memref<8x8x128xf32, #tpu.memory_space<vmem>>, vector<1x8x128xf32>,
    %49 = vector.extract_strided_slice %16 {offsets = [32, 0], sizes = [8, 128], strides = [1, 1]} : vector<64x128xf32> to vector<8x128xf32>
    %cst_30 = arith.constant dense<0.000000e+00> : vector<8x128xf32>
    %50 = tpu.matmul %45, %18, %cst_30 {dimension_numbers = #tpu.dot_dimension_numbers<[1], [0], [0], [1], [0, 0, 1, 1], [], []>} : vector<8x128xf32>, vector<128x128xf32>, vector<8x128xf32> -> vector<8x128xf32>
    %51 = arith.addf %49, %50 : vector<8x128xf32>
    %52 = math.tanh %51 : vector<8x128xf32>
    %c4 = arith.constant 4 : index
    %c0_31 = arith.constant 0 : index
    %c0_32 = arith.constant 0 : index
    %53 = vector.load %arg9[%c4, %c0_31, %c0_32] : memref<8x8x128xf32, #tpu.memory_space<vmem>>, vector<1x8x128xf32>
    %54 = vector.shape_cast %53 : vector<1x8x128xf32> to vector<8x128xf32>
    %55 = vector.shape_cast %52 : vector<8x128xf32> to vector<1x8x128xf32>
    tpu.vector_store %arg9[%c4, %c0_31, %c0_32], %55 {strides = array<i32>} : memref<8x8x128xf32, #tpu.memory_space<vmem>>, vector<1x8x128xf32>,
    %56 = vector.extract_strided_slice %16 {offsets = [40, 0], sizes = [8, 128], strides = [1, 1]} : vector<64x128xf32> to vector<8x128xf32>
    %cst_33 = arith.constant dense<0.000000e+00> : vector<8x128xf32>
    %57 = tpu.matmul %52, %18, %cst_33 {dimension_numbers = #tpu.dot_dimension_numbers<[1], [0], [0], [1], [0, 0, 1, 1], [], []>} : vector<8x128xf32>, vector<128x128xf32>, vector<8x128xf32> -> vector<8x128xf32>
    %58 = arith.addf %56, %57 : vector<8x128xf32>
    %59 = math.tanh %58 : vector<8x128xf32>
    %c5 = arith.constant 5 : index
    %c0_34 = arith.constant 0 : index
    %c0_35 = arith.constant 0 : index
    %60 = vector.load %arg9[%c5, %c0_34, %c0_35] : memref<8x8x128xf32, #tpu.memory_space<vmem>>, vector<1x8x128xf32>
    %61 = vector.shape_cast %60 : vector<1x8x128xf32> to vector<8x128xf32>
    %62 = vector.shape_cast %59 : vector<8x128xf32> to vector<1x8x128xf32>
    tpu.vector_store %arg9[%c5, %c0_34, %c0_35], %62 {strides = array<i32>} : memref<8x8x128xf32, #tpu.memory_space<vmem>>, vector<1x8x128xf32>,
    %63 = vector.extract_strided_slice %16 {offsets = [48, 0], sizes = [8, 128], strides = [1, 1]} : vector<64x128xf32> to vector<8x128xf32>
    %cst_36 = arith.constant dense<0.000000e+00> : vector<8x128xf32>
    %64 = tpu.matmul %59, %18, %cst_36 {dimension_numbers = #tpu.dot_dimension_numbers<[1], [0], [0], [1], [0, 0, 1, 1], [], []>} : vector<8x128xf32>, vector<128x128xf32>, vector<8x128xf32> -> vector<8x128xf32>
    %65 = arith.addf %63, %64 : vector<8x128xf32>
    %66 = math.tanh %65 : vector<8x128xf32>
    %c6 = arith.constant 6 : index
    %c0_37 = arith.constant 0 : index
    %c0_38 = arith.constant 0 : index
    %67 = vector.load %arg9[%c6, %c0_37, %c0_38] : memref<8x8x128xf32, #tpu.memory_space<vmem>>, vector<1x8x128xf32>
    %68 = vector.shape_cast %67 : vector<1x8x128xf32> to vector<8x128xf32>
    %69 = vector.shape_cast %66 : vector<8x128xf32> to vector<1x8x128xf32>
    tpu.vector_store %arg9[%c6, %c0_37, %c0_38], %69 {strides = array<i32>} : memref<8x8x128xf32, #tpu.memory_space<vmem>>, vector<1x8x128xf32>,
    %70 = vector.extract_strided_slice %16 {offsets = [56, 0], sizes = [8, 128], strides = [1, 1]} : vector<64x128xf32> to vector<8x128xf32>
    %cst_39 = arith.constant dense<0.000000e+00> : vector<8x128xf32>
    %71 = tpu.matmul %66, %18, %cst_39 {dimension_numbers = #tpu.dot_dimension_numbers<[1], [0], [0], [1], [0, 0, 1, 1], [], []>} : vector<8x128xf32>, vector<128x128xf32>, vector<8x128xf32> -> vector<8x128xf32>
    %72 = arith.addf %70, %71 : vector<8x128xf32>
    %73 = math.tanh %72 : vector<8x128xf32>
    %c7 = arith.constant 7 : index
    %c0_40 = arith.constant 0 : index
    %c0_41 = arith.constant 0 : index
    %74 = vector.load %arg9[%c7, %c0_40, %c0_41] : memref<8x8x128xf32, #tpu.memory_space<vmem>>, vector<1x8x128xf32>
    %75 = vector.shape_cast %74 : vector<1x8x128xf32> to vector<8x128xf32>
    %76 = vector.shape_cast %73 : vector<8x128xf32> to vector<1x8x128xf32>
    tpu.vector_store %arg9[%c7, %c0_40, %c0_41], %76 {strides = array<i32>} : memref<8x8x128xf32, #tpu.memory_space<vmem>>, vector<1x8x128xf32>,
    %c0_42 = arith.constant 0 : index
    %c0_43 = arith.constant 0 : index
    %c0_44 = arith.constant 0 : index
    %77 = vector.load %arg9[%c0_42, %c0_43, %c0_44] : memref<8x8x128xf32, #tpu.memory_space<vmem>>, vector<8x8x128xf32>
    %78 = vector.shape_cast %77 : vector<8x8x128xf32> to vector<64x128xf32>
    %c1_45 = arith.constant 1 : index
    %c0_46 = arith.constant 0 : index
    %c0_47 = arith.constant 0 : index
    %79 = vector.load %arg3[%c1_45, %c0_46, %c0_47] : memref<2x128x128xf32, #tpu.memory_space<vmem>>, vector<1x128x128xf32>
    %80 = vector.shape_cast %79 : vector<1x128x128xf32> to vector<128x128xf32>
    %cst_48 = arith.constant dense<0.000000e+00> : vector<64x128xf32>
    %81 = tpu.matmul %78, %80, %cst_48 {dimension_numbers = #tpu.dot_dimension_numbers<[1], [0], [0], [1], [0, 0, 1, 1], [], []>} : vector<64x128xf32>, vector<128x128xf32>, vector<64x128xf32> -> vector<64x128xf32>
    %c1_49 = arith.constant 1 : index
    %c0_50 = arith.constant 0 : index
    %c0_51 = arith.constant 0 : index
    %82 = vector.load %arg5[%c1_49, %c0_50, %c0_51] : memref<2x1x128xf32, #tpu.memory_space<vmem>>, vector<1x1x128xf32>
    %83 = vector.shape_cast %82 : vector<1x1x128xf32> to vector<1x128xf32>
    %84 = vector.broadcast %83 : vector<1x128xf32> to vector<64x128xf32>
    %85 = arith.addf %81, %84 : vector<64x128xf32>
    %c1_52 = arith.constant 1 : index
    %c0_53 = arith.constant 0 : index
    %c0_54 = arith.constant 0 : index
    %86 = vector.load %arg4[%c1_52, %c0_53, %c0_54] : memref<2x128x128xf32, #tpu.memory_space<vmem>>, vector<1x128x128xf32>
    %87 = vector.shape_cast %86 : vector<1x128x128xf32> to vector<128x128xf32>
    %c1_55 = arith.constant 1 : index
    %c0_56 = arith.constant 0 : index
    %c0_57 = arith.constant 0 : index
    %88 = vector.load %arg2[%c1_55, %c0_56, %c0_57] : memref<2x8x128xf32, #tpu.memory_space<vmem>>, vector<1x8x128xf32>
    %89 = vector.shape_cast %88 : vector<1x8x128xf32> to vector<8x128xf32>
    %90 = vector.extract_strided_slice %85 {offsets = [0, 0], sizes = [8, 128], strides = [1, 1]} : vector<64x128xf32> to vector<8x128xf32>
    %cst_58 = arith.constant dense<0.000000e+00> : vector<8x128xf32>
    %91 = tpu.matmul %89, %87, %cst_58 {dimension_numbers = #tpu.dot_dimension_numbers<[1], [0], [0], [1], [0, 0, 1, 1], [], []>} : vector<8x128xf32>, vector<128x128xf32>, vector<8x128xf32> -> vector<8x128xf32>
    %92 = arith.addf %90, %91 : vector<8x128xf32>
    %93 = math.tanh %92 : vector<8x128xf32>
    %94 = vector.extract_strided_slice %85 {offsets = [8, 0], sizes = [8, 128], strides = [1, 1]} : vector<64x128xf32> to vector<8x128xf32>
    %cst_59 = arith.constant dense<0.000000e+00> : vector<8x128xf32>
    %95 = tpu.matmul %93, %87, %cst_59 {dimension_numbers = #tpu.dot_dimension_numbers<[1], [0], [0], [1], [0, 0, 1, 1], [], []>} : vector<8x128xf32>, vector<128x128xf32>, vector<8x128xf32> -> vector<8x128xf32>
    %96 = arith.addf %94, %95 : vector<8x128xf32>
    %97 = math.tanh %96 : vector<8x128xf32>
    %98 = vector.extract_strided_slice %85 {offsets = [16, 0], sizes = [8, 128], strides = [1, 1]} : vector<64x128xf32> to vector<8x128xf32>
    %cst_60 = arith.constant dense<0.000000e+00> : vector<8x128xf32>
    %99 = tpu.matmul %97, %87, %cst_60 {dimension_numbers = #tpu.dot_dimension_numbers<[1], [0], [0], [1], [0, 0, 1, 1], [], []>} : vector<8x128xf32>, vector<128x128xf32>, vector<8x128xf32> -> vector<8x128xf32>
    %100 = arith.addf %98, %99 : vector<8x128xf32>
    %101 = math.tanh %100 : vector<8x128xf32>
    %102 = vector.extract_strided_slice %85 {offsets = [24, 0], sizes = [8, 128], strides = [1, 1]} : vector<64x128xf32> to vector<8x128xf32>
    %cst_61 = arith.constant dense<0.000000e+00> : vector<8x128xf32>
    %103 = tpu.matmul %101, %87, %cst_61 {dimension_numbers = #tpu.dot_dimension_numbers<[1], [0], [0], [1], [0, 0, 1, 1], [], []>} : vector<8x128xf32>, vector<128x128xf32>, vector<8x128xf32> -> vector<8x128xf32>
    %104 = arith.addf %102, %103 : vector<8x128xf32>
    %105 = math.tanh %104 : vector<8x128xf32>
    %106 = vector.extract_strided_slice %85 {offsets = [32, 0], sizes = [8, 128], strides = [1, 1]} : vector<64x128xf32> to vector<8x128xf32>
    %cst_62 = arith.constant dense<0.000000e+00> : vector<8x128xf32>
    %107 = tpu.matmul %105, %87, %cst_62 {dimension_numbers = #tpu.dot_dimension_numbers<[1], [0], [0], [1], [0, 0, 1, 1], [], []>} : vector<8x128xf32>, vector<128x128xf32>, vector<8x128xf32> -> vector<8x128xf32>
    %108 = arith.addf %106, %107 : vector<8x128xf32>
    %109 = math.tanh %108 : vector<8x128xf32>
    %110 = vector.extract_strided_slice %85 {offsets = [40, 0], sizes = [8, 128], strides = [1, 1]} : vector<64x128xf32> to vector<8x128xf32>
    %cst_63 = arith.constant dense<0.000000e+00> : vector<8x128xf32>
    %111 = tpu.matmul %109, %87, %cst_63 {dimension_numbers = #tpu.dot_dimension_numbers<[1], [0], [0], [1], [0, 0, 1, 1], [], []>} : vector<8x128xf32>, vector<128x128xf32>, vector<8x128xf32> -> vector<8x128xf32>
    %112 = arith.addf %110, %111 : vector<8x128xf32>
    %113 = math.tanh %112 : vector<8x128xf32>
    %114 = vector.extract_strided_slice %85 {offsets = [48, 0], sizes = [8, 128], strides = [1, 1]} : vector<64x128xf32> to vector<8x128xf32>
    %cst_64 = arith.constant dense<0.000000e+00> : vector<8x128xf32>
    %115 = tpu.matmul %113, %87, %cst_64 {dimension_numbers = #tpu.dot_dimension_numbers<[1], [0], [0], [1], [0, 0, 1, 1], [], []>} : vector<8x128xf32>, vector<128x128xf32>, vector<8x128xf32> -> vector<8x128xf32>
    %116 = arith.addf %114, %115 : vector<8x128xf32>
    %117 = math.tanh %116 : vector<8x128xf32>
    %118 = vector.extract_strided_slice %85 {offsets = [56, 0], sizes = [8, 128], strides = [1, 1]} : vector<64x128xf32> to vector<8x128xf32>
    %cst_65 = arith.constant dense<0.000000e+00> : vector<8x128xf32>
    %119 = tpu.matmul %117, %87, %cst_65 {dimension_numbers = #tpu.dot_dimension_numbers<[1], [0], [0], [1], [0, 0, 1, 1], [], []>} : vector<8x128xf32>, vector<128x128xf32>, vector<8x128xf32> -> vector<8x128xf32>
    %120 = arith.addf %118, %119 : vector<8x128xf32>
    %121 = math.tanh %120 : vector<8x128xf32>
    %c0_66 = arith.constant 0 : index
    %c0_67 = arith.constant 0 : index
    %122 = vector.load %arg6[%c0_66, %c0_67] : memref<128x128xf32, #tpu.memory_space<vmem>>, vector<128x128xf32>
    %cst_68 = arith.constant dense<0.000000e+00> : vector<8x128xf32>
    %123 = tpu.matmul %121, %122, %cst_68 {dimension_numbers = #tpu.dot_dimension_numbers<[1], [0], [0], [1], [0, 0, 1, 1], [], []>} : vector<8x128xf32>, vector<128x128xf32>, vector<8x128xf32> -> vector<8x128xf32>
    %c0_69 = arith.constant 0 : index
    %c0_70 = arith.constant 0 : index
    %124 = vector.load %arg7[%c0_69, %c0_70] : memref<1x128xf32, #tpu.memory_space<vmem>>, vector<1x128xf32>
    %125 = vector.broadcast %124 : vector<1x128xf32> to vector<8x128xf32>
    %126 = arith.addf %123, %125 : vector<8x128xf32>
    %c0_71 = arith.constant 0 : index
    %c0_72 = arith.constant 0 : index
    %127 = vector.load %arg8[%c0_71, %c0_72] : memref<8x128xf32, #tpu.memory_space<vmem>>, vector<8x128xf32>
    tpu.vector_store %arg8[%c0_71, %c0_72], %126 {strides = array<i32>} : memref<8x128xf32, #tpu.memory_space<vmem>>, vector<8x128xf32>,
    return
  }
}

</mosaic_0001>

<llo_original>
// kernel: decoder_rnn_forward.1
$region0: #{decoder_rnn_forward.1}
  #allocation0 [shape = 'u32[]', space=smem, size = 0x4, offset = 0x4, fixed_abs, tag = 'smem constant byte address 0x4 - core index']
  #allocation1 [shape = 'u32[144,128]{1,0:T(1,128)}', space=vmem, size = 0x12000, scoped, tag = 'internal scratch']
  #allocation2 [shape = 'f32[8,8,128]{2,1,0:T(8,128)}', space=vmem, size = 0x8000, scoped, tag = 'scratch operand']
  %s0 = inlined_call_operand.vmem [shape: s32[64,1], index: 0, kind: input, shape index: {}]
  %s1 = inlined_call_operand.vmem [shape: f32[128,128], index: 1, kind: input, shape index: {}]
  %s2 = inlined_call_operand.vmem [shape: f32[2,8,128], index: 2, kind: input, shape index: {}]
  %s3 = inlined_call_operand.vmem [shape: f32[2,128,128], index: 3, kind: input, shape index: {}]
  %s4 = inlined_call_operand.vmem [shape: f32[2,128,128], index: 4, kind: input, shape index: {}]
  %s5 = inlined_call_operand.vmem [shape: f32[2,1,128], index: 5, kind: input, shape index: {}]
  %s6 = inlined_call_operand.vmem [shape: f32[128,128], index: 6, kind: input, shape index: {}]
  %s7 = inlined_call_operand.vmem [shape: f32[1,128], index: 7, kind: input, shape index: {}]
  %s8 = inlined_call_operand.vmem [shape: f32[8,128], index: 8, kind: output, shape index: {}]
  %s9 = sld [smem:[#allocation0]]
  $region42: #{decoder_rnn_forward.1} parent=0
    _
  %s11 = ssub.s32 1, %s9
  %s12 = scalar_select 0, %s11, %s9
  // Predicated region
  $region2: #{decoder_rnn_forward.1} parent=0 // pred_check
    _
  $region3: #{decoder_rnn_forward.1} parent=0 // pred_check_branch
    %14 = sbr.rel (0) target = $region5
  $region4: #{decoder_rnn_forward.1} parent=0 // pred_region
    _
  $region5: #{decoder_rnn_forward.1} parent=0 // pred_fallthru
    _
  // Predicated region
  $region6: #{decoder_rnn_forward.1} parent=0 // pred_check
    _
  $region7: #{decoder_rnn_forward.1} parent=0 // pred_check_branch
    %16 = sbr.rel (0) target = $region9
  $region8: #{decoder_rnn_forward.1} parent=0 // pred_region
    _
  $region9: #{decoder_rnn_forward.1} parent=0 // pred_fallthru
    _
  // Predicated region
  $region10: #{decoder_rnn_forward.1} parent=0 // pred_check
    _
  $region11: #{decoder_rnn_forward.1} parent=0 // pred_check_branch
    %18 = sbr.rel (0) target = $region13
  $region12: #{decoder_rnn_forward.1} parent=0 // pred_region
    _
  $region13: #{decoder_rnn_forward.1} parent=0 // pred_fallthru
    _
  // Predicated region
  $region14: #{decoder_rnn_forward.1} parent=0 // pred_check
    _
  $region15: #{decoder_rnn_forward.1} parent=0 // pred_check_branch
    %20 = sbr.rel (0) target = $region17
  $region16: #{decoder_rnn_forward.1} parent=0 // pred_region
    _
  $region17: #{decoder_rnn_forward.1} parent=0 // pred_fallthru
    _
  // Predicated region
  $region18: #{decoder_rnn_forward.1} parent=0 // pred_check
    _
  $region19: #{decoder_rnn_forward.1} parent=0 // pred_check_branch
    %22 = sbr.rel (0) target = $region21
  $region20: #{decoder_rnn_forward.1} parent=0 // pred_region
    _
  $region21: #{decoder_rnn_forward.1} parent=0 // pred_fallthru
    _
  // Predicated region
  $region22: #{decoder_rnn_forward.1} parent=0 // pred_check
    _
  $region23: #{decoder_rnn_forward.1} parent=0 // pred_check_branch
    %24 = sbr.rel (0) target = $region25
  $region24: #{decoder_rnn_forward.1} parent=0 // pred_region
    _
  $region25: #{decoder_rnn_forward.1} parent=0 // pred_fallthru
    _
  // Predicated region
  $region26: #{decoder_rnn_forward.1} parent=0 // pred_check
    _
  $region27: #{decoder_rnn_forward.1} parent=0 // pred_check_branch
    %26 = sbr.rel (0) target = $region29
  $region28: #{decoder_rnn_forward.1} parent=0 // pred_region
    _
  $region29: #{decoder_rnn_forward.1} parent=0 // pred_fallthru
    _
  // Predicated region
  $region30: #{decoder_rnn_forward.1} parent=0 // pred_check
    _
  $region31: #{decoder_rnn_forward.1} parent=0 // pred_check_branch
    %28 = sbr.rel (0) target = $region33
  $region32: #{decoder_rnn_forward.1} parent=0 // pred_region
    _
  $region33: #{decoder_rnn_forward.1} parent=0 // pred_fallthru
    _
  %v29 = vld [vmem:[%s0] sm:$0xff]
  %v30 = vld [vmem:[%s0 + $0x8] sm:$0xff]
  %v31 = vld [vmem:[%s0 + $0x10] sm:$0xff]
  %v32 = vld [vmem:[%s0 + $0x18] sm:$0xff]
  %v33 = vld [vmem:[%s0 + $0x20] sm:$0xff]
  %v34 = vld [vmem:[%s0 + $0x28] sm:$0xff]
  %v35 = vld [vmem:[%s0 + $0x30] sm:$0xff]
  %v36 = vld [vmem:[%s0 + $0x38] sm:$0xff]
  %v37 = vlaneseq
  %v38 = vand.u32 %v37, 127
  %39 = vset.pattern.permute.xlu0 0
  %40 = vperm.xlu0 %39, %v29
  %v41 = vpop.permute.xlu0 %40
  %42 = vset.pattern.permute.xlu0 0
  %43 = vperm.xlu0 %42, %v30
  %v44 = vpop.permute.xlu0 %43
  %45 = vset.pattern.permute.xlu0 0
  %46 = vperm.xlu0 %45, %v31
  %v47 = vpop.permute.xlu0 %46
  %48 = vset.pattern.permute.xlu0 0
  %49 = vperm.xlu0 %48, %v32
  %v50 = vpop.permute.xlu0 %49
  %51 = vset.pattern.permute.xlu0 0
  %52 = vperm.xlu0 %51, %v33
  %v53 = vpop.permute.xlu0 %52
  %54 = vset.pattern.permute.xlu0 0
  %55 = vperm.xlu0 %54, %v34
  %v56 = vpop.permute.xlu0 %55
  %57 = vset.pattern.permute.xlu0 0
  %58 = vperm.xlu0 %57, %v35
  %v59 = vpop.permute.xlu0 %58
  %60 = vset.pattern.permute.xlu0 0
  %61 = vperm.xlu0 %60, %v36
  %v62 = vpop.permute.xlu0 %61
  %vm63 = vcmp.eq.s32.totalorder %v41, %v38
  %vm64 = vcmp.eq.s32.totalorder %v44, %v38
  %vm65 = vcmp.eq.s32.totalorder %v47, %v38
  %vm66 = vcmp.eq.s32.totalorder %v50, %v38
  %vm67 = vcmp.eq.s32.totalorder %v53, %v38
  %vm68 = vcmp.eq.s32.totalorder %v56, %v38
  %vm69 = vcmp.eq.s32.totalorder %v59, %v38
  %vm70 = vcmp.eq.s32.totalorder %v62, %v38
  %v71 = vsel %vm63, 1, 0
  %v72 = vsel %vm64, 1, 0
  %v73 = vsel %vm65, 1, 0
  %v74 = vsel %vm66, 1, 0
  %v75 = vsel %vm67, 1, 0
  %v76 = vsel %vm68, 1, 0
  %v77 = vsel %vm69, 1, 0
  %v78 = vsel %vm70, 1, 0
  %v79 = vcvt.s32.f32 %v71
  %v80 = vcvt.s32.f32 %v72
  %v81 = vcvt.s32.f32 %v73
  %v82 = vcvt.s32.f32 %v74
  %v83 = vcvt.s32.f32 %v75
  %v84 = vcvt.s32.f32 %v76
  %v85 = vcvt.s32.f32 %v77
  %v86 = vcvt.s32.f32 %v78
  %v87 = vld [vmem:[%s1] sm:$0xff]
  %v88 = vld [vmem:[%s1 + $0x8] sm:$0xff]
  %v89 = vld [vmem:[%s1 + $0x10] sm:$0xff]
  %v90 = vld [vmem:[%s1 + $0x18] sm:$0xff]
  %v91 = vld [vmem:[%s1 + $0x20] sm:$0xff]
  %v92 = vld [vmem:[%s1 + $0x28] sm:$0xff]
  %v93 = vld [vmem:[%s1 + $0x30] sm:$0xff]
  %v94 = vld [vmem:[%s1 + $0x38] sm:$0xff]
  %v95 = vld [vmem:[%s1 + $0x40] sm:$0xff]
  %v96 = vld [vmem:[%s1 + $0x48] sm:$0xff]
  %v97 = vld [vmem:[%s1 + $0x50] sm:$0xff]
  %v98 = vld [vmem:[%s1 + $0x58] sm:$0xff]
  %v99 = vld [vmem:[%s1 + $0x60] sm:$0xff]
  %v100 = vld [vmem:[%s1 + $0x68] sm:$0xff]
  %v101 = vld [vmem:[%s1 + $0x70] sm:$0xff]
  %v102 = vld [vmem:[%s1 + $0x78] sm:$0xff]
  %103 = vmatprep.subr.mxu0 0.0
  %104 = vmatpush1.msra.mxu0 %v102
  %105 = vmatprep.subr.mxu0 0.0
  %106 = vmatpush1.msra.mxu0 %v101
  %107 = vmatprep.subr.mxu0 0.0
  %108 = vmatpush1.msra.mxu0 %v100
  %109 = vmatprep.subr.mxu0 0.0
  %110 = vmatpush1.msra.mxu0 %v99
  %111 = vmatprep.subr.mxu0 0.0
  %112 = vmatpush1.msra.mxu0 %v98
  %113 = vmatprep.subr.mxu0 0.0
  %114 = vmatpush1.msra.mxu0 %v97
  %115 = vmatprep.subr.mxu0 0.0
  %116 = vmatpush1.msra.mxu0 %v96
  %117 = vmatprep.subr.mxu0 0.0
  %118 = vmatpush1.msra.mxu0 %v95
  %119 = vmatprep.subr.mxu0 0.0
  %120 = vmatpush1.msra.mxu0 %v94
  %121 = vmatprep.subr.mxu0 0.0
  %122 = vmatpush1.msra.mxu0 %v93
  %123 = vmatprep.subr.mxu0 0.0
  %124 = vmatpush1.msra.mxu0 %v92
  %125 = vmatprep.subr.mxu0 0.0
  %126 = vmatpush1.msra.mxu0 %v91
  %127 = vmatprep.subr.mxu0 0.0
  %128 = vmatpush1.msra.mxu0 %v90
  %129 = vmatprep.subr.mxu0 0.0
  %130 = vmatpush1.msra.mxu0 %v89
  %131 = vmatprep.subr.mxu0 0.0
  %132 = vmatpush1.msra.mxu0 %v88
  %133 = vmatprep.subr.mxu0 0.0
  %134 = vmatpush1.msra.mxu0 %v87
  %135 = vmatprep.subr.mxu0 0.0
  %136 = vmatpush2.msra.mxu0 0.0
  %137 = vmatprep.subr.mxu0 0.0
  %138 = vmatpush2.msra.mxu0 0.0
  %139 = vmatprep.subr.mxu0 0.0
  %140 = vmatpush2.msra.mxu0 0.0
  %141 = vmatprep.subr.mxu0 0.0
  %142 = vmatpush2.msra.mxu0 0.0
  %143 = vmatprep.subr.mxu0 0.0
  %144 = vmatpush2.msra.mxu0 0.0
  %145 = vmatprep.subr.mxu0 0.0
  %146 = vmatpush2.msra.mxu0 0.0
  %147 = vmatprep.subr.mxu0 0.0
  %148 = vmatpush2.msra.mxu0 0.0
  %149 = vmatprep.subr.mxu0 0.0
  %150 = vmatpush2.msra.mxu0 0.0
  %151 = vmatprep.subr.mxu0 0.0
  %152 = vmatpush2.msra.mxu0 0.0
  %153 = vmatprep.subr.mxu0 0.0
  %154 = vmatpush2.msra.mxu0 0.0
  %155 = vmatprep.subr.mxu0 0.0
  %156 = vmatpush2.msra.mxu0 0.0
  %157 = vmatprep.subr.mxu0 0.0
  %158 = vmatpush2.msra.mxu0 0.0
  %159 = vmatprep.subr.mxu0 0.0
  %160 = vmatpush2.msra.mxu0 0.0
  %161 = vmatprep.subr.mxu0 0.0
  %162 = vmatpush2.msra.mxu0 0.0
  %163 = vmatprep.subr.mxu0 0.0
  %164 = vmatpush2.msra.mxu0 0.0
  %165 = vmatprep.subr.mxu0 0.0
  %166 = vmatpush2.msra.mxu0 0.0
  %167 = vmatprep.mubr.f32.mxu0 0.0
  %168 = vmatmul.mubr.f32.gmra.mxu0 %v79
  %v169 = vpop.f32.mrf.mxu0
  %v170 = vadd.f32 0.0, %v169
  %v171 = vpop.f32.mrf.mxu0
  %172 = vmatprep.mubr.f32.mxu0 0.0
  %173 = vmatmul.mubr.f32.gmra.mxu0 %v80
  %v174 = vpop.f32.mrf.mxu0
  %v175 = vadd.f32 0.0, %v174
  %v176 = vpop.f32.mrf.mxu0
  %177 = vmatprep.mubr.f32.mxu0 0.0
  %178 = vmatmul.mubr.f32.gmra.mxu0 %v81
  %v179 = vpop.f32.mrf.mxu0
  %v180 = vadd.f32 0.0, %v179
  %v181 = vpop.f32.mrf.mxu0
  %182 = vmatprep.mubr.f32.mxu0 0.0
  %183 = vmatmul.mubr.f32.gmra.mxu0 %v82
  %v184 = vpop.f32.mrf.mxu0
  %v185 = vadd.f32 0.0, %v184
  %v186 = vpop.f32.mrf.mxu0
  %187 = vmatprep.mubr.f32.mxu0 0.0
  %188 = vmatmul.mubr.f32.gmra.mxu0 %v83
  %v189 = vpop.f32.mrf.mxu0
  %v190 = vadd.f32 0.0, %v189
  %v191 = vpop.f32.mrf.mxu0
  %192 = vmatprep.mubr.f32.mxu0 0.0
  %193 = vmatmul.mubr.f32.gmra.mxu0 %v84
  %v194 = vpop.f32.mrf.mxu0
  %v195 = vadd.f32 0.0, %v194
  %v196 = vpop.f32.mrf.mxu0
  %197 = vmatprep.mubr.f32.mxu0 0.0
  %198 = vmatmul.mubr.f32.gmra.mxu0 %v85
  %v199 = vpop.f32.mrf.mxu0
  %v200 = vadd.f32 0.0, %v199
  %v201 = vpop.f32.mrf.mxu0
  %202 = vmatprep.mubr.f32.mxu0 0.0
  %203 = vmatmul.mubr.f32.gmra.mxu0 %v86
  %v204 = vpop.f32.mrf.mxu0
  %v205 = vadd.f32 0.0, %v204
  %v206 = vpop.f32.mrf.mxu0
  %207 = vdwg.mxu0
  %v208 = vmax.f32 %v170, 0.0
  %v209 = vmax.f32 %v175, 0.0
  %v210 = vmax.f32 %v180, 0.0
  %v211 = vmax.f32 %v185, 0.0
  %v212 = vmax.f32 %v190, 0.0
  %v213 = vmax.f32 %v195, 0.0
  %v214 = vmax.f32 %v200, 0.0
  %v215 = vmax.f32 %v205, 0.0
  %v216 = vld [vmem:[%s3] sm:$0xff]
  %v217 = vld [vmem:[%s3 + $0x8] sm:$0xff]
  %v218 = vld [vmem:[%s3 + $0x10] sm:$0xff]
  %v219 = vld [vmem:[%s3 + $0x18] sm:$0xff]
  %v220 = vld [vmem:[%s3 + $0x20] sm:$0xff]
  %v221 = vld [vmem:[%s3 + $0x28] sm:$0xff]
  %v222 = vld [vmem:[%s3 + $0x30] sm:$0xff]
  %v223 = vld [vmem:[%s3 + $0x38] sm:$0xff]
  %v224 = vld [vmem:[%s3 + $0x40] sm:$0xff]
  %v225 = vld [vmem:[%s3 + $0x48] sm:$0xff]
  %v226 = vld [vmem:[%s3 + $0x50] sm:$0xff]
  %v227 = vld [vmem:[%s3 + $0x58] sm:$0xff]
  %v228 = vld [vmem:[%s3 + $0x60] sm:$0xff]
  %v229 = vld [vmem:[%s3 + $0x68] sm:$0xff]
  %v230 = vld [vmem:[%s3 + $0x70] sm:$0xff]
  %v231 = vld [vmem:[%s3 + $0x78] sm:$0xff]
  %v232 = vld [vmem:[%s5] sm:$0x1]
  %v234 = vlaneseq
  %v235 = vshrl.u32 %v234, 7
  %v236 = vsub.s32 0, %v235
  %v237 = vrot.slane %v232, %v236
  %239 = vmatprep.subr.mxu0 0.0
  %240 = vmatpush1.msra.mxu0 %v231
  %241 = vmatprep.subr.mxu0 0.0
  %242 = vmatpush1.msra.mxu0 %v230
  %243 = vmatprep.subr.mxu0 0.0
  %244 = vmatpush1.msra.mxu0 %v229
  %245 = vmatprep.subr.mxu0 0.0
  %246 = vmatpush1.msra.mxu0 %v228
  %247 = vmatprep.subr.mxu0 0.0
  %248 = vmatpush1.msra.mxu0 %v227
  %249 = vmatprep.subr.mxu0 0.0
  %250 = vmatpush1.msra.mxu0 %v226
  %251 = vmatprep.subr.mxu0 0.0
  %252 = vmatpush1.msra.mxu0 %v225
  %253 = vmatprep.subr.mxu0 0.0
  %254 = vmatpush1.msra.mxu0 %v224
  %255 = vmatprep.subr.mxu0 0.0
  %256 = vmatpush1.msra.mxu0 %v223
  %257 = vmatprep.subr.mxu0 0.0
  %258 = vmatpush1.msra.mxu0 %v222
  %259 = vmatprep.subr.mxu0 0.0
  %260 = vmatpush1.msra.mxu0 %v221
  %261 = vmatprep.subr.mxu0 0.0
  %262 = vmatpush1.msra.mxu0 %v220
  %263 = vmatprep.subr.mxu0 0.0
  %264 = vmatpush1.msra.mxu0 %v219
  %265 = vmatprep.subr.mxu0 0.0
  %266 = vmatpush1.msra.mxu0 %v218
  %267 = vmatprep.subr.mxu0 0.0
  %268 = vmatpush1.msra.mxu0 %v217
  %269 = vmatprep.subr.mxu0 0.0
  %270 = vmatpush1.msra.mxu0 %v216
  %271 = vmatprep.subr.mxu0 0.0
  %272 = vmatpush2.msra.mxu0 0.0
  %273 = vmatprep.subr.mxu0 0.0
  %274 = vmatpush2.msra.mxu0 0.0
  %275 = vmatprep.subr.mxu0 0.0
  %276 = vmatpush2.msra.mxu0 0.0
  %277 = vmatprep.subr.mxu0 0.0
  %278 = vmatpush2.msra.mxu0 0.0
  %279 = vmatprep.subr.mxu0 0.0
  %280 = vmatpush2.msra.mxu0 0.0
  %281 = vmatprep.subr.mxu0 0.0
  %282 = vmatpush2.msra.mxu0 0.0
  %283 = vmatprep.subr.mxu0 0.0
  %284 = vmatpush2.msra.mxu0 0.0
  %285 = vmatprep.subr.mxu0 0.0
  %286 = vmatpush2.msra.mxu0 0.0
  %287 = vmatprep.subr.mxu0 0.0
  %288 = vmatpush2.msra.mxu0 0.0
  %289 = vmatprep.subr.mxu0 0.0
  %290 = vmatpush2.msra.mxu0 0.0
  %291 = vmatprep.subr.mxu0 0.0
  %292 = vmatpush2.msra.mxu0 0.0
  %293 = vmatprep.subr.mxu0 0.0
  %294 = vmatpush2.msra.mxu0 0.0
  %295 = vmatprep.subr.mxu0 0.0
  %296 = vmatpush2.msra.mxu0 0.0
  %297 = vmatprep.subr.mxu0 0.0
  %298 = vmatpush2.msra.mxu0 0.0
  %299 = vmatprep.subr.mxu0 0.0
  %300 = vmatpush2.msra.mxu0 0.0
  %301 = vmatprep.subr.mxu0 0.0
  %302 = vmatpush2.msra.mxu0 0.0
  %303 = vmatprep.mubr.f32.mxu0 0.0
  %304 = vmatmul.mubr.f32.gmra.mxu0 %v208
  %v305 = vpop.f32.mrf.mxu0
  %v306 = vadd.f32 %v237, %v305
  %v307 = vpop.f32.mrf.mxu0
  %308 = vmatprep.mubr.f32.mxu0 0.0
  %309 = vmatmul.mubr.f32.gmra.mxu0 %v209
  %v310 = vpop.f32.mrf.mxu0
  %v311 = vadd.f32 %v237, %v310
  %v312 = vpop.f32.mrf.mxu0
  %313 = vmatprep.mubr.f32.mxu0 0.0
  %314 = vmatmul.mubr.f32.gmra.mxu0 %v210
  %v315 = vpop.f32.mrf.mxu0
  %v316 = vadd.f32 %v237, %v315
  %v317 = vpop.f32.mrf.mxu0
  %318 = vmatprep.mubr.f32.mxu0 0.0
  %319 = vmatmul.mubr.f32.gmra.mxu0 %v211
  %v320 = vpop.f32.mrf.mxu0
  %v321 = vadd.f32 %v237, %v320
  %v322 = vpop.f32.mrf.mxu0
  %323 = vmatprep.mubr.f32.mxu0 0.0
  %324 = vmatmul.mubr.f32.gmra.mxu0 %v212
  %v325 = vpop.f32.mrf.mxu0
  %v326 = vadd.f32 %v237, %v325
  %v327 = vpop.f32.mrf.mxu0
  %328 = vmatprep.mubr.f32.mxu0 0.0
  %329 = vmatmul.mubr.f32.gmra.mxu0 %v213
  %v330 = vpop.f32.mrf.mxu0
  %v331 = vadd.f32 %v237, %v330
  %v332 = vpop.f32.mrf.mxu0
  %333 = vmatprep.mubr.f32.mxu0 0.0
  %334 = vmatmul.mubr.f32.gmra.mxu0 %v214
  %v335 = vpop.f32.mrf.mxu0
  %v336 = vadd.f32 %v237, %v335
  %v337 = vpop.f32.mrf.mxu0
  %338 = vmatprep.mubr.f32.mxu0 0.0
  %339 = vmatmul.mubr.f32.gmra.mxu0 %v215
  %v340 = vpop.f32.mrf.mxu0
  %v341 = vadd.f32 %v237, %v340
  %v342 = vpop.f32.mrf.mxu0
  %343 = vdwg.mxu0
  %v344 = vld [vmem:[%s4] sm:$0xff]
  %v345 = vld [vmem:[%s4 + $0x8] sm:$0xff]
  %v346 = vld [vmem:[%s4 + $0x10] sm:$0xff]
  %v347 = vld [vmem:[%s4 + $0x18] sm:$0xff]
  %v348 = vld [vmem:[%s4 + $0x20] sm:$0xff]
  %v349 = vld [vmem:[%s4 + $0x28] sm:$0xff]
  %v350 = vld [vmem:[%s4 + $0x30] sm:$0xff]
  %v351 = vld [vmem:[%s4 + $0x38] sm:$0xff]
  %v352 = vld [vmem:[%s4 + $0x40] sm:$0xff]
  %v353 = vld [vmem:[%s4 + $0x48] sm:$0xff]
  %v354 = vld [vmem:[%s4 + $0x50] sm:$0xff]
  %v355 = vld [vmem:[%s4 + $0x58] sm:$0xff]
  %v356 = vld [vmem:[%s4 + $0x60] sm:$0xff]
  %v357 = vld [vmem:[%s4 + $0x68] sm:$0xff]
  %v358 = vld [vmem:[%s4 + $0x70] sm:$0xff]
  %v359 = vld [vmem:[%s4 + $0x78] sm:$0xff]
  %v360 = vld [vmem:[%s2] sm:$0xff]
  %361 = vmatprep.subr.mxu0 0.0
  %362 = vmatpush1.msra.mxu0 %v359
  %363 = vmatprep.subr.mxu0 0.0
  %364 = vmatpush1.msra.mxu0 %v358
  %365 = vmatprep.subr.mxu0 0.0
  %366 = vmatpush1.msra.mxu0 %v357
  %367 = vmatprep.subr.mxu0 0.0
  %368 = vmatpush1.msra.mxu0 %v356
  %369 = vmatprep.subr.mxu0 0.0
  %370 = vmatpush1.msra.mxu0 %v355
  %371 = vmatprep.subr.mxu0 0.0
  %372 = vmatpush1.msra.mxu0 %v354
  %373 = vmatprep.subr.mxu0 0.0
  %374 = vmatpush1.msra.mxu0 %v353
  %375 = vmatprep.subr.mxu0 0.0
  %376 = vmatpush1.msra.mxu0 %v352
  %377 = vmatprep.subr.mxu0 0.0
  %378 = vmatpush1.msra.mxu0 %v351
  %379 = vmatprep.subr.mxu0 0.0
  %380 = vmatpush1.msra.mxu0 %v350
  %381 = vmatprep.subr.mxu0 0.0
  %382 = vmatpush1.msra.mxu0 %v349
  %383 = vmatprep.subr.mxu0 0.0
  %384 = vmatpush1.msra.mxu0 %v348
  %385 = vmatprep.subr.mxu0 0.0
  %386 = vmatpush1.msra.mxu0 %v347
  %387 = vmatprep.subr.mxu0 0.0
  %388 = vmatpush1.msra.mxu0 %v346
  %389 = vmatprep.subr.mxu0 0.0
  %390 = vmatpush1.msra.mxu0 %v345
  %391 = vmatprep.subr.mxu0 0.0
  %392 = vmatpush1.msra.mxu0 %v344
  %393 = vmatprep.subr.mxu0 0.0
  %394 = vmatpush2.msra.mxu0 0.0
  %395 = vmatprep.subr.mxu0 0.0
  %396 = vmatpush2.msra.mxu0 0.0
  %397 = vmatprep.subr.mxu0 0.0
  %398 = vmatpush2.msra.mxu0 0.0
  %399 = vmatprep.subr.mxu0 0.0
  %400 = vmatpush2.msra.mxu0 0.0
  %401 = vmatprep.subr.mxu0 0.0
  %402 = vmatpush2.msra.mxu0 0.0
  %403 = vmatprep.subr.mxu0 0.0
  %404 = vmatpush2.msra.mxu0 0.0
  %405 = vmatprep.subr.mxu0 0.0
  %406 = vmatpush2.msra.mxu0 0.0
  %407 = vmatprep.subr.mxu0 0.0
  %408 = vmatpush2.msra.mxu0 0.0
  %409 = vmatprep.subr.mxu0 0.0
  %410 = vmatpush2.msra.mxu0 0.0
  %411 = vmatprep.subr.mxu0 0.0
  %412 = vmatpush2.msra.mxu0 0.0
  %413 = vmatprep.subr.mxu0 0.0
  %414 = vmatpush2.msra.mxu0 0.0
  %415 = vmatprep.subr.mxu0 0.0
  %416 = vmatpush2.msra.mxu0 0.0
  %417 = vmatprep.subr.mxu0 0.0
  %418 = vmatpush2.msra.mxu0 0.0
  %419 = vmatprep.subr.mxu0 0.0
  %420 = vmatpush2.msra.mxu0 0.0
  %421 = vmatprep.subr.mxu0 0.0
  %422 = vmatpush2.msra.mxu0 0.0
  %423 = vmatprep.subr.mxu0 0.0
  %424 = vmatpush2.msra.mxu0 0.0
  %425 = vmatprep.mubr.f32.mxu0 0.0
  %426 = vmatmul.mubr.f32.gmra.mxu0 %v360
  %v427 = vpop.f32.mrf.mxu0
  %v428 = vadd.f32 0.0, %v427
  %v429 = vpop.f32.mrf.mxu0
  %430 = vdwg.mxu0
  %v431 = vadd.f32 %v306, %v428
  %v432 = vtanh.pop %v431
  %433 = vst [vmem:[#allocation2] sm:$0xff] %v432
  %434 = vmatprep.subr.mxu0 0.0
  %435 = vmatpush1.msra.mxu0 %v359
  %436 = vmatprep.subr.mxu0 0.0
  %437 = vmatpush1.msra.mxu0 %v358
  %438 = vmatprep.subr.mxu0 0.0
  %439 = vmatpush1.msra.mxu0 %v357
  %440 = vmatprep.subr.mxu0 0.0
  %441 = vmatpush1.msra.mxu0 %v356
  %442 = vmatprep.subr.mxu0 0.0
  %443 = vmatpush1.msra.mxu0 %v355
  %444 = vmatprep.subr.mxu0 0.0
  %445 = vmatpush1.msra.mxu0 %v354
  %446 = vmatprep.subr.mxu0 0.0
  %447 = vmatpush1.msra.mxu0 %v353
  %448 = vmatprep.subr.mxu0 0.0
  %449 = vmatpush1.msra.mxu0 %v352
  %450 = vmatprep.subr.mxu0 0.0
  %451 = vmatpush1.msra.mxu0 %v351
  %452 = vmatprep.subr.mxu0 0.0
  %453 = vmatpush1.msra.mxu0 %v350
  %454 = vmatprep.subr.mxu0 0.0
  %455 = vmatpush1.msra.mxu0 %v349
  %456 = vmatprep.subr.mxu0 0.0
  %457 = vmatpush1.msra.mxu0 %v348
  %458 = vmatprep.subr.mxu0 0.0
  %459 = vmatpush1.msra.mxu0 %v347
  %460 = vmatprep.subr.mxu0 0.0
  %461 = vmatpush1.msra.mxu0 %v346
  %462 = vmatprep.subr.mxu0 0.0
  %463 = vmatpush1.msra.mxu0 %v345
  %464 = vmatprep.subr.mxu0 0.0
  %465 = vmatpush1.msra.mxu0 %v344
  %466 = vmatprep.subr.mxu0 0.0
  %467 = vmatpush2.msra.mxu0 0.0
  %468 = vmatprep.subr.mxu0 0.0
  %469 = vmatpush2.msra.mxu0 0.0
  %470 = vmatprep.subr.mxu0 0.0
  %471 = vmatpush2.msra.mxu0 0.0
  %472 = vmatprep.subr.mxu0 0.0
  %473 = vmatpush2.msra.mxu0 0.0
  %474 = vmatprep.subr.mxu0 0.0
  %475 = vmatpush2.msra.mxu0 0.0
  %476 = vmatprep.subr.mxu0 0.0
  %477 = vmatpush2.msra.mxu0 0.0
  %478 = vmatprep.subr.mxu0 0.0
  %479 = vmatpush2.msra.mxu0 0.0
  %480 = vmatprep.subr.mxu0 0.0
  %481 = vmatpush2.msra.mxu0 0.0
  %482 = vmatprep.subr.mxu0 0.0
  %483 = vmatpush2.msra.mxu0 0.0
  %484 = vmatprep.subr.mxu0 0.0
  %485 = vmatpush2.msra.mxu0 0.0
  %486 = vmatprep.subr.mxu0 0.0
  %487 = vmatpush2.msra.mxu0 0.0
  %488 = vmatprep.subr.mxu0 0.0
  %489 = vmatpush2.msra.mxu0 0.0
  %490 = vmatprep.subr.mxu0 0.0
  %491 = vmatpush2.msra.mxu0 0.0
  %492 = vmatprep.subr.mxu0 0.0
  %493 = vmatpush2.msra.mxu0 0.0
  %494 = vmatprep.subr.mxu0 0.0
  %495 = vmatpush2.msra.mxu0 0.0
  %496 = vmatprep.subr.mxu0 0.0
  %497 = vmatpush2.msra.mxu0 0.0
  %498 = vmatprep.mubr.f32.mxu0 0.0
  %499 = vmatmul.mubr.f32.gmra.mxu0 %v432
  %v500 = vpop.f32.mrf.mxu0
  %v501 = vadd.f32 0.0, %v500
  %v502 = vpop.f32.mrf.mxu0
  %503 = vdwg.mxu0
  %v504 = vadd.f32 %v311, %v501
  %v505 = vtanh.pop %v504
  %s506 = scalar_lea.vmem [#allocation2], 8
  %507 = vst [vmem:[%s506] sm:$0xff] %v505
  %508 = vmatprep.subr.mxu0 0.0
  %509 = vmatpush1.msra.mxu0 %v359
  %510 = vmatprep.subr.mxu0 0.0
  %511 = vmatpush1.msra.mxu0 %v358
  %512 = vmatprep.subr.mxu0 0.0
  %513 = vmatpush1.msra.mxu0 %v357
  %514 = vmatprep.subr.mxu0 0.0
  %515 = vmatpush1.msra.mxu0 %v356
  %516 = vmatprep.subr.mxu0 0.0
  %517 = vmatpush1.msra.mxu0 %v355
  %518 = vmatprep.subr.mxu0 0.0
  %519 = vmatpush1.msra.mxu0 %v354
  %520 = vmatprep.subr.mxu0 0.0
  %521 = vmatpush1.msra.mxu0 %v353
  %522 = vmatprep.subr.mxu0 0.0
  %523 = vmatpush1.msra.mxu0 %v352
  %524 = vmatprep.subr.mxu0 0.0
  %525 = vmatpush1.msra.mxu0 %v351
  %526 = vmatprep.subr.mxu0 0.0
  %527 = vmatpush1.msra.mxu0 %v350
  %528 = vmatprep.subr.mxu0 0.0
  %529 = vmatpush1.msra.mxu0 %v349
  %530 = vmatprep.subr.mxu0 0.0
  %531 = vmatpush1.msra.mxu0 %v348
  %532 = vmatprep.subr.mxu0 0.0
  %533 = vmatpush1.msra.mxu0 %v347
  %534 = vmatprep.subr.mxu0 0.0
  %535 = vmatpush1.msra.mxu0 %v346
  %536 = vmatprep.subr.mxu0 0.0
  %537 = vmatpush1.msra.mxu0 %v345
  %538 = vmatprep.subr.mxu0 0.0
  %539 = vmatpush1.msra.mxu0 %v344
  %540 = vmatprep.subr.mxu0 0.0
  %541 = vmatpush2.msra.mxu0 0.0
  %542 = vmatprep.subr.mxu0 0.0
  %543 = vmatpush2.msra.mxu0 0.0
  %544 = vmatprep.subr.mxu0 0.0
  %545 = vmatpush2.msra.mxu0 0.0
  %546 = vmatprep.subr.mxu0 0.0
  %547 = vmatpush2.msra.mxu0 0.0
  %548 = vmatprep.subr.mxu0 0.0
  %549 = vmatpush2.msra.mxu0 0.0
  %550 = vmatprep.subr.mxu0 0.0
  %551 = vmatpush2.msra.mxu0 0.0
  %552 = vmatprep.subr.mxu0 0.0
  %553 = vmatpush2.msra.mxu0 0.0
  %554 = vmatprep.subr.mxu0 0.0
  %555 = vmatpush2.msra.mxu0 0.0
  %556 = vmatprep.subr.mxu0 0.0
  %557 = vmatpush2.msra.mxu0 0.0
  %558 = vmatprep.subr.mxu0 0.0
  %559 = vmatpush2.msra.mxu0 0.0
  %560 = vmatprep.subr.mxu0 0.0
  %561 = vmatpush2.msra.mxu0 0.0
  %562 = vmatprep.subr.mxu0 0.0
  %563 = vmatpush2.msra.mxu0 0.0
  %564 = vmatprep.subr.mxu0 0.0
  %565 = vmatpush2.msra.mxu0 0.0
  %566 = vmatprep.subr.mxu0 0.0
  %567 = vmatpush2.msra.mxu0 0.0
  %568 = vmatprep.subr.mxu0 0.0
  %569 = vmatpush2.msra.mxu0 0.0
  %570 = vmatprep.subr.mxu0 0.0
  %571 = vmatpush2.msra.mxu0 0.0
  %572 = vmatprep.mubr.f32.mxu0 0.0
  %573 = vmatmul.mubr.f32.gmra.mxu0 %v505
  %v574 = vpop.f32.mrf.mxu0
  %v575 = vadd.f32 0.0, %v574
  %v576 = vpop.f32.mrf.mxu0
  %577 = vdwg.mxu0
  %v578 = vadd.f32 %v316, %v575
  %v579 = vtanh.pop %v578
  %s580 = scalar_lea.vmem [#allocation2], 16
  %581 = vst [vmem:[%s580] sm:$0xff] %v579
  %582 = vmatprep.subr.mxu0 0.0
  %583 = vmatpush1.msra.mxu0 %v359
  %584 = vmatprep.subr.mxu0 0.0
  %585 = vmatpush1.msra.mxu0 %v358
  %586 = vmatprep.subr.mxu0 0.0
  %587 = vmatpush1.msra.mxu0 %v357
  %588 = vmatprep.subr.mxu0 0.0
  %589 = vmatpush1.msra.mxu0 %v356
  %590 = vmatprep.subr.mxu0 0.0
  %591 = vmatpush1.msra.mxu0 %v355
  %592 = vmatprep.subr.mxu0 0.0
  %593 = vmatpush1.msra.mxu0 %v354
  %594 = vmatprep.subr.mxu0 0.0
  %595 = vmatpush1.msra.mxu0 %v353
  %596 = vmatprep.subr.mxu0 0.0
  %597 = vmatpush1.msra.mxu0 %v352
  %598 = vmatprep.subr.mxu0 0.0
  %599 = vmatpush1.msra.mxu0 %v351
  %600 = vmatprep.subr.mxu0 0.0
  %601 = vmatpush1.msra.mxu0 %v350
  %602 = vmatprep.subr.mxu0 0.0
  %603 = vmatpush1.msra.mxu0 %v349
  %604 = vmatprep.subr.mxu0 0.0
  %605 = vmatpush1.msra.mxu0 %v348
  %606 = vmatprep.subr.mxu0 0.0
  %607 = vmatpush1.msra.mxu0 %v347
  %608 = vmatprep.subr.mxu0 0.0
  %609 = vmatpush1.msra.mxu0 %v346
  %610 = vmatprep.subr.mxu0 0.0
  %611 = vmatpush1.msra.mxu0 %v345
  %612 = vmatprep.subr.mxu0 0.0
  %613 = vmatpush1.msra.mxu0 %v344
  %614 = vmatprep.subr.mxu0 0.0
  %615 = vmatpush2.msra.mxu0 0.0
  %616 = vmatprep.subr.mxu0 0.0
  %617 = vmatpush2.msra.mxu0 0.0
  %618 = vmatprep.subr.mxu0 0.0
  %619 = vmatpush2.msra.mxu0 0.0
  %620 = vmatprep.subr.mxu0 0.0
  %621 = vmatpush2.msra.mxu0 0.0
  %622 = vmatprep.subr.mxu0 0.0
  %623 = vmatpush2.msra.mxu0 0.0
  %624 = vmatprep.subr.mxu0 0.0
  %625 = vmatpush2.msra.mxu0 0.0
  %626 = vmatprep.subr.mxu0 0.0
  %627 = vmatpush2.msra.mxu0 0.0
  %628 = vmatprep.subr.mxu0 0.0
  %629 = vmatpush2.msra.mxu0 0.0
  %630 = vmatprep.subr.mxu0 0.0
  %631 = vmatpush2.msra.mxu0 0.0
  %632 = vmatprep.subr.mxu0 0.0
  %633 = vmatpush2.msra.mxu0 0.0
  %634 = vmatprep.subr.mxu0 0.0
  %635 = vmatpush2.msra.mxu0 0.0
  %636 = vmatprep.subr.mxu0 0.0
  %637 = vmatpush2.msra.mxu0 0.0
  %638 = vmatprep.subr.mxu0 0.0
  %639 = vmatpush2.msra.mxu0 0.0
  %640 = vmatprep.subr.mxu0 0.0
  %641 = vmatpush2.msra.mxu0 0.0
  %642 = vmatprep.subr.mxu0 0.0
  %643 = vmatpush2.msra.mxu0 0.0
  %644 = vmatprep.subr.mxu0 0.0
  %645 = vmatpush2.msra.mxu0 0.0
  %646 = vmatprep.mubr.f32.mxu0 0.0
  %647 = vmatmul.mubr.f32.gmra.mxu0 %v579
  %v648 = vpop.f32.mrf.mxu0
  %v649 = vadd.f32 0.0, %v648
  %v650 = vpop.f32.mrf.mxu0
  %651 = vdwg.mxu0
  %v652 = vadd.f32 %v321, %v649
  %v653 = vtanh.pop %v652
  %s654 = scalar_lea.vmem [#allocation2], 24
  %655 = vst [vmem:[%s654] sm:$0xff] %v653
  %656 = vmatprep.subr.mxu0 0.0
  %657 = vmatpush1.msra.mxu0 %v359
  %658 = vmatprep.subr.mxu0 0.0
  %659 = vmatpush1.msra.mxu0 %v358
  %660 = vmatprep.subr.mxu0 0.0
  %661 = vmatpush1.msra.mxu0 %v357
  %662 = vmatprep.subr.mxu0 0.0
  %663 = vmatpush1.msra.mxu0 %v356
  %664 = vmatprep.subr.mxu0 0.0
  %665 = vmatpush1.msra.mxu0 %v355
  %666 = vmatprep.subr.mxu0 0.0
  %667 = vmatpush1.msra.mxu0 %v354
  %668 = vmatprep.subr.mxu0 0.0
  %669 = vmatpush1.msra.mxu0 %v353
  %670 = vmatprep.subr.mxu0 0.0
  %671 = vmatpush1.msra.mxu0 %v352
  %672 = vmatprep.subr.mxu0 0.0
  %673 = vmatpush1.msra.mxu0 %v351
  %674 = vmatprep.subr.mxu0 0.0
  %675 = vmatpush1.msra.mxu0 %v350
  %676 = vmatprep.subr.mxu0 0.0
  %677 = vmatpush1.msra.mxu0 %v349
  %678 = vmatprep.subr.mxu0 0.0
  %679 = vmatpush1.msra.mxu0 %v348
  %680 = vmatprep.subr.mxu0 0.0
  %681 = vmatpush1.msra.mxu0 %v347
  %682 = vmatprep.subr.mxu0 0.0
  %683 = vmatpush1.msra.mxu0 %v346
  %684 = vmatprep.subr.mxu0 0.0
  %685 = vmatpush1.msra.mxu0 %v345
  %686 = vmatprep.subr.mxu0 0.0
  %687 = vmatpush1.msra.mxu0 %v344
  %688 = vmatprep.subr.mxu0 0.0
  %689 = vmatpush2.msra.mxu0 0.0
  %690 = vmatprep.subr.mxu0 0.0
  %691 = vmatpush2.msra.mxu0 0.0
  %692 = vmatprep.subr.mxu0 0.0
  %693 = vmatpush2.msra.mxu0 0.0
  %694 = vmatprep.subr.mxu0 0.0
  %695 = vmatpush2.msra.mxu0 0.0
  %696 = vmatprep.subr.mxu0 0.0
  %697 = vmatpush2.msra.mxu0 0.0
  %698 = vmatprep.subr.mxu0 0.0
  %699 = vmatpush2.msra.mxu0 0.0
  %700 = vmatprep.subr.mxu0 0.0
  %701 = vmatpush2.msra.mxu0 0.0
  %702 = vmatprep.subr.mxu0 0.0
  %703 = vmatpush2.msra.mxu0 0.0
  %704 = vmatprep.subr.mxu0 0.0
  %705 = vmatpush2.msra.mxu0 0.0
  %706 = vmatprep.subr.mxu0 0.0
  %707 = vmatpush2.msra.mxu0 0.0
  %708 = vmatprep.subr.mxu0 0.0
  %709 = vmatpush2.msra.mxu0 0.0
  %710 = vmatprep.subr.mxu0 0.0
  %711 = vmatpush2.msra.mxu0 0.0
  %712 = vmatprep.subr.mxu0 0.0
  %713 = vmatpush2.msra.mxu0 0.0
  %714 = vmatprep.subr.mxu0 0.0
  %715 = vmatpush2.msra.mxu0 0.0
  %716 = vmatprep.subr.mxu0 0.0
  %717 = vmatpush2.msra.mxu0 0.0
  %718 = vmatprep.subr.mxu0 0.0
  %719 = vmatpush2.msra.mxu0 0.0
  %720 = vmatprep.mubr.f32.mxu0 0.0
  %721 = vmatmul.mubr.f32.gmra.mxu0 %v653
  %v722 = vpop.f32.mrf.mxu0
  %v723 = vadd.f32 0.0, %v722
  %v724 = vpop.f32.mrf.mxu0
  %725 = vdwg.mxu0
  %v726 = vadd.f32 %v326, %v723
  %v727 = vtanh.pop %v726
  %s728 = scalar_lea.vmem [#allocation2], 32
  %729 = vst [vmem:[%s728] sm:$0xff] %v727
  %730 = vmatprep.subr.mxu0 0.0
  %731 = vmatpush1.msra.mxu0 %v359
  %732 = vmatprep.subr.mxu0 0.0
  %733 = vmatpush1.msra.mxu0 %v358
  %734 = vmatprep.subr.mxu0 0.0
  %735 = vmatpush1.msra.mxu0 %v357
  %736 = vmatprep.subr.mxu0 0.0
  %737 = vmatpush1.msra.mxu0 %v356
  %738 = vmatprep.subr.mxu0 0.0
  %739 = vmatpush1.msra.mxu0 %v355
  %740 = vmatprep.subr.mxu0 0.0
  %741 = vmatpush1.msra.mxu0 %v354
  %742 = vmatprep.subr.mxu0 0.0
  %743 = vmatpush1.msra.mxu0 %v353
  %744 = vmatprep.subr.mxu0 0.0
  %745 = vmatpush1.msra.mxu0 %v352
  %746 = vmatprep.subr.mxu0 0.0
  %747 = vmatpush1.msra.mxu0 %v351
  %748 = vmatprep.subr.mxu0 0.0
  %749 = vmatpush1.msra.mxu0 %v350
  %750 = vmatprep.subr.mxu0 0.0
  %751 = vmatpush1.msra.mxu0 %v349
  %752 = vmatprep.subr.mxu0 0.0
  %753 = vmatpush1.msra.mxu0 %v348
  %754 = vmatprep.subr.mxu0 0.0
  %755 = vmatpush1.msra.mxu0 %v347
  %756 = vmatprep.subr.mxu0 0.0
  %757 = vmatpush1.msra.mxu0 %v346
  %758 = vmatprep.subr.mxu0 0.0
  %759 = vmatpush1.msra.mxu0 %v345
  %760 = vmatprep.subr.mxu0 0.0
  %761 = vmatpush1.msra.mxu0 %v344
  %762 = vmatprep.subr.mxu0 0.0
  %763 = vmatpush2.msra.mxu0 0.0
  %764 = vmatprep.subr.mxu0 0.0
  %765 = vmatpush2.msra.mxu0 0.0
  %766 = vmatprep.subr.mxu0 0.0
  %767 = vmatpush2.msra.mxu0 0.0
  %768 = vmatprep.subr.mxu0 0.0
  %769 = vmatpush2.msra.mxu0 0.0
  %770 = vmatprep.subr.mxu0 0.0
  %771 = vmatpush2.msra.mxu0 0.0
  %772 = vmatprep.subr.mxu0 0.0
  %773 = vmatpush2.msra.mxu0 0.0
  %774 = vmatprep.subr.mxu0 0.0
  %775 = vmatpush2.msra.mxu0 0.0
  %776 = vmatprep.subr.mxu0 0.0
  %777 = vmatpush2.msra.mxu0 0.0
  %778 = vmatprep.subr.mxu0 0.0
  %779 = vmatpush2.msra.mxu0 0.0
  %780 = vmatprep.subr.mxu0 0.0
  %781 = vmatpush2.msra.mxu0 0.0
  %782 = vmatprep.subr.mxu0 0.0
  %783 = vmatpush2.msra.mxu0 0.0
  %784 = vmatprep.subr.mxu0 0.0
  %785 = vmatpush2.msra.mxu0 0.0
  %786 = vmatprep.subr.mxu0 0.0
  %787 = vmatpush2.msra.mxu0 0.0
  %788 = vmatprep.subr.mxu0 0.0
  %789 = vmatpush2.msra.mxu0 0.0
  %790 = vmatprep.subr.mxu0 0.0
  %791 = vmatpush2.msra.mxu0 0.0
  %792 = vmatprep.subr.mxu0 0.0
  %793 = vmatpush2.msra.mxu0 0.0
  %794 = vmatprep.mubr.f32.mxu0 0.0
  %795 = vmatmul.mubr.f32.gmra.mxu0 %v727
  %v796 = vpop.f32.mrf.mxu0
  %v797 = vadd.f32 0.0, %v796
  %v798 = vpop.f32.mrf.mxu0
  %799 = vdwg.mxu0
  %v800 = vadd.f32 %v331, %v797
  %v801 = vtanh.pop %v800
  %s802 = scalar_lea.vmem [#allocation2], 40
  %803 = vst [vmem:[%s802] sm:$0xff] %v801
  %804 = vmatprep.subr.mxu0 0.0
  %805 = vmatpush1.msra.mxu0 %v359
  %806 = vmatprep.subr.mxu0 0.0
  %807 = vmatpush1.msra.mxu0 %v358
  %808 = vmatprep.subr.mxu0 0.0
  %809 = vmatpush1.msra.mxu0 %v357
  %810 = vmatprep.subr.mxu0 0.0
  %811 = vmatpush1.msra.mxu0 %v356
  %812 = vmatprep.subr.mxu0 0.0
  %813 = vmatpush1.msra.mxu0 %v355
  %814 = vmatprep.subr.mxu0 0.0
  %815 = vmatpush1.msra.mxu0 %v354
  %816 = vmatprep.subr.mxu0 0.0
  %817 = vmatpush1.msra.mxu0 %v353
  %818 = vmatprep.subr.mxu0 0.0
  %819 = vmatpush1.msra.mxu0 %v352
  %820 = vmatprep.subr.mxu0 0.0
  %821 = vmatpush1.msra.mxu0 %v351
  %822 = vmatprep.subr.mxu0 0.0
  %823 = vmatpush1.msra.mxu0 %v350
  %824 = vmatprep.subr.mxu0 0.0
  %825 = vmatpush1.msra.mxu0 %v349
  %826 = vmatprep.subr.mxu0 0.0
  %827 = vmatpush1.msra.mxu0 %v348
  %828 = vmatprep.subr.mxu0 0.0
  %829 = vmatpush1.msra.mxu0 %v347
  %830 = vmatprep.subr.mxu0 0.0
  %831 = vmatpush1.msra.mxu0 %v346
  %832 = vmatprep.subr.mxu0 0.0
  %833 = vmatpush1.msra.mxu0 %v345
  %834 = vmatprep.subr.mxu0 0.0
  %835 = vmatpush1.msra.mxu0 %v344
  %836 = vmatprep.subr.mxu0 0.0
  %837 = vmatpush2.msra.mxu0 0.0
  %838 = vmatprep.subr.mxu0 0.0
  %839 = vmatpush2.msra.mxu0 0.0
  %840 = vmatprep.subr.mxu0 0.0
  %841 = vmatpush2.msra.mxu0 0.0
  %842 = vmatprep.subr.mxu0 0.0
  %843 = vmatpush2.msra.mxu0 0.0
  %844 = vmatprep.subr.mxu0 0.0
  %845 = vmatpush2.msra.mxu0 0.0
  %846 = vmatprep.subr.mxu0 0.0
  %847 = vmatpush2.msra.mxu0 0.0
  %848 = vmatprep.subr.mxu0 0.0
  %849 = vmatpush2.msra.mxu0 0.0
  %850 = vmatprep.subr.mxu0 0.0
  %851 = vmatpush2.msra.mxu0 0.0
  %852 = vmatprep.subr.mxu0 0.0
  %853 = vmatpush2.msra.mxu0 0.0
  %854 = vmatprep.subr.mxu0 0.0
  %855 = vmatpush2.msra.mxu0 0.0
  %856 = vmatprep.subr.mxu0 0.0
  %857 = vmatpush2.msra.mxu0 0.0
  %858 = vmatprep.subr.mxu0 0.0
  %859 = vmatpush2.msra.mxu0 0.0
  %860 = vmatprep.subr.mxu0 0.0
  %861 = vmatpush2.msra.mxu0 0.0
  %862 = vmatprep.subr.mxu0 0.0
  %863 = vmatpush2.msra.mxu0 0.0
  %864 = vmatprep.subr.mxu0 0.0
  %865 = vmatpush2.msra.mxu0 0.0
  %866 = vmatprep.subr.mxu0 0.0
  %867 = vmatpush2.msra.mxu0 0.0
  %868 = vmatprep.mubr.f32.mxu0 0.0
  %869 = vmatmul.mubr.f32.gmra.mxu0 %v801
  %v870 = vpop.f32.mrf.mxu0
  %v871 = vadd.f32 0.0, %v870
  %v872 = vpop.f32.mrf.mxu0
  %873 = vdwg.mxu0
  %v874 = vadd.f32 %v336, %v871
  %v875 = vtanh.pop %v874
  %s876 = scalar_lea.vmem [#allocation2], 48
  %877 = vst [vmem:[%s876] sm:$0xff] %v875
  %878 = vmatprep.subr.mxu0 0.0
  %879 = vmatpush1.msra.mxu0 %v359
  %880 = vmatprep.subr.mxu0 0.0
  %881 = vmatpush1.msra.mxu0 %v358
  %882 = vmatprep.subr.mxu0 0.0
  %883 = vmatpush1.msra.mxu0 %v357
  %884 = vmatprep.subr.mxu0 0.0
  %885 = vmatpush1.msra.mxu0 %v356
  %886 = vmatprep.subr.mxu0 0.0
  %887 = vmatpush1.msra.mxu0 %v355
  %888 = vmatprep.subr.mxu0 0.0
  %889 = vmatpush1.msra.mxu0 %v354
  %890 = vmatprep.subr.mxu0 0.0
  %891 = vmatpush1.msra.mxu0 %v353
  %892 = vmatprep.subr.mxu0 0.0
  %893 = vmatpush1.msra.mxu0 %v352
  %894 = vmatprep.subr.mxu0 0.0
  %895 = vmatpush1.msra.mxu0 %v351
  %896 = vmatprep.subr.mxu0 0.0
  %897 = vmatpush1.msra.mxu0 %v350
  %898 = vmatprep.subr.mxu0 0.0
  %899 = vmatpush1.msra.mxu0 %v349
  %900 = vmatprep.subr.mxu0 0.0
  %901 = vmatpush1.msra.mxu0 %v348
  %902 = vmatprep.subr.mxu0 0.0
  %903 = vmatpush1.msra.mxu0 %v347
  %904 = vmatprep.subr.mxu0 0.0
  %905 = vmatpush1.msra.mxu0 %v346
  %906 = vmatprep.subr.mxu0 0.0
  %907 = vmatpush1.msra.mxu0 %v345
  %908 = vmatprep.subr.mxu0 0.0
  %909 = vmatpush1.msra.mxu0 %v344
  %910 = vmatprep.subr.mxu0 0.0
  %911 = vmatpush2.msra.mxu0 0.0
  %912 = vmatprep.subr.mxu0 0.0
  %913 = vmatpush2.msra.mxu0 0.0
  %914 = vmatprep.subr.mxu0 0.0
  %915 = vmatpush2.msra.mxu0 0.0
  %916 = vmatprep.subr.mxu0 0.0
  %917 = vmatpush2.msra.mxu0 0.0
  %918 = vmatprep.subr.mxu0 0.0
  %919 = vmatpush2.msra.mxu0 0.0
  %920 = vmatprep.subr.mxu0 0.0
  %921 = vmatpush2.msra.mxu0 0.0
  %922 = vmatprep.subr.mxu0 0.0
  %923 = vmatpush2.msra.mxu0 0.0
  %924 = vmatprep.subr.mxu0 0.0
  %925 = vmatpush2.msra.mxu0 0.0
  %926 = vmatprep.subr.mxu0 0.0
  %927 = vmatpush2.msra.mxu0 0.0
  %928 = vmatprep.subr.mxu0 0.0
  %929 = vmatpush2.msra.mxu0 0.0
  %930 = vmatprep.subr.mxu0 0.0
  %931 = vmatpush2.msra.mxu0 0.0
  %932 = vmatprep.subr.mxu0 0.0
  %933 = vmatpush2.msra.mxu0 0.0
  %934 = vmatprep.subr.mxu0 0.0
  %935 = vmatpush2.msra.mxu0 0.0
  %936 = vmatprep.subr.mxu0 0.0
  %937 = vmatpush2.msra.mxu0 0.0
  %938 = vmatprep.subr.mxu0 0.0
  %939 = vmatpush2.msra.mxu0 0.0
  %940 = vmatprep.subr.mxu0 0.0
  %941 = vmatpush2.msra.mxu0 0.0
  %942 = vmatprep.mubr.f32.mxu0 0.0
  %943 = vmatmul.mubr.f32.gmra.mxu0 %v875
  %v944 = vpop.f32.mrf.mxu0
  %v945 = vadd.f32 0.0, %v944
  %v946 = vpop.f32.mrf.mxu0
  %947 = vdwg.mxu0
  %v948 = vadd.f32 %v341, %v945
  %v949 = vtanh.pop %v948
  %s950 = scalar_lea.vmem [#allocation2], 56
  %951 = vst [vmem:[%s950] sm:$0xff] %v949
  %v952 = vld [vmem:[#allocation2] sm:$0xff]
  %v953 = vld [vmem:[#allocation2 + $0x8] sm:$0xff]
  %v954 = vld [vmem:[#allocation2 + $0x10] sm:$0xff]
  %v955 = vld [vmem:[#allocation2 + $0x18] sm:$0xff]
  %v956 = vld [vmem:[#allocation2 + $0x20] sm:$0xff]
  %v957 = vld [vmem:[#allocation2 + $0x28] sm:$0xff]
  %v958 = vld [vmem:[#allocation2 + $0x30] sm:$0xff]
  %v959 = vld [vmem:[#allocation2 + $0x38] sm:$0xff]
  %s960 = scalar_lea.vmem %s3, 128
  %v961 = vld [vmem:[%s960] sm:$0xff]
  %v962 = vld [vmem:[%s960 + $0x8] sm:$0xff]
  %v963 = vld [vmem:[%s960 + $0x10] sm:$0xff]
  %v964 = vld [vmem:[%s960 + $0x18] sm:$0xff]
  %v965 = vld [vmem:[%s960 + $0x20] sm:$0xff]
  %v966 = vld [vmem:[%s960 + $0x28] sm:$0xff]
  %v967 = vld [vmem:[%s960 + $0x30] sm:$0xff]
  %v968 = vld [vmem:[%s960 + $0x38] sm:$0xff]
  %v969 = vld [vmem:[%s960 + $0x40] sm:$0xff]
  %v970 = vld [vmem:[%s960 + $0x48] sm:$0xff]
  %v971 = vld [vmem:[%s960 + $0x50] sm:$0xff]
  %v972 = vld [vmem:[%s960 + $0x58] sm:$0xff]
  %v973 = vld [vmem:[%s960 + $0x60] sm:$0xff]
  %v974 = vld [vmem:[%s960 + $0x68] sm:$0xff]
  %v975 = vld [vmem:[%s960 + $0x70] sm:$0xff]
  %v976 = vld [vmem:[%s960 + $0x78] sm:$0xff]
  %s977 = scalar_lea.vmem %s5, 1
  %v978 = vld [vmem:[%s977] sm:$0x1]
  %v980 = vlaneseq
  %v981 = vshrl.u32 %v980, 7
  %v982 = vsub.s32 0, %v981
  %v983 = vrot.slane %v978, %v982
  %985 = vmatprep.subr.mxu0 0.0
  %986 = vmatpush1.msra.mxu0 %v976
  %987 = vmatprep.subr.mxu0 0.0
  %988 = vmatpush1.msra.mxu0 %v975
  %989 = vmatprep.subr.mxu0 0.0
  %990 = vmatpush1.msra.mxu0 %v974
  %991 = vmatprep.subr.mxu0 0.0
  %992 = vmatpush1.msra.mxu0 %v973
  %993 = vmatprep.subr.mxu0 0.0
  %994 = vmatpush1.msra.mxu0 %v972
  %995 = vmatprep.subr.mxu0 0.0
  %996 = vmatpush1.msra.mxu0 %v971
  %997 = vmatprep.subr.mxu0 0.0
  %998 = vmatpush1.msra.mxu0 %v970
  %999 = vmatprep.subr.mxu0 0.0
  %1000 = vmatpush1.msra.mxu0 %v969
  %1001 = vmatprep.subr.mxu0 0.0
  %1002 = vmatpush1.msra.mxu0 %v968
  %1003 = vmatprep.subr.mxu0 0.0
  %1004 = vmatpush1.msra.mxu0 %v967
  %1005 = vmatprep.subr.mxu0 0.0
  %1006 = vmatpush1.msra.mxu0 %v966
  %1007 = vmatprep.subr.mxu0 0.0
  %1008 = vmatpush1.msra.mxu0 %v965
  %1009 = vmatprep.subr.mxu0 0.0
  %1010 = vmatpush1.msra.mxu0 %v964
  %1011 = vmatprep.subr.mxu0 0.0
  %1012 = vmatpush1.msra.mxu0 %v963
  %1013 = vmatprep.subr.mxu0 0.0
  %1014 = vmatpush1.msra.mxu0 %v962
  %1015 = vmatprep.subr.mxu0 0.0
  %1016 = vmatpush1.msra.mxu0 %v961
  %1017 = vmatprep.subr.mxu0 0.0
  %1018 = vmatpush2.msra.mxu0 0.0
  %1019 = vmatprep.subr.mxu0 0.0
  %1020 = vmatpush2.msra.mxu0 0.0
  %1021 = vmatprep.subr.mxu0 0.0
  %1022 = vmatpush2.msra.mxu0 0.0
  %1023 = vmatprep.subr.mxu0 0.0
  %1024 = vmatpush2.msra.mxu0 0.0
  %1025 = vmatprep.subr.mxu0 0.0
  %1026 = vmatpush2.msra.mxu0 0.0
  %1027 = vmatprep.subr.mxu0 0.0
  %1028 = vmatpush2.msra.mxu0 0.0
  %1029 = vmatprep.subr.mxu0 0.0
  %1030 = vmatpush2.msra.mxu0 0.0
  %1031 = vmatprep.subr.mxu0 0.0
  %1032 = vmatpush2.msra.mxu0 0.0
  %1033 = vmatprep.subr.mxu0 0.0
  %1034 = vmatpush2.msra.mxu0 0.0
  %1035 = vmatprep.subr.mxu0 0.0
  %1036 = vmatpush2.msra.mxu0 0.0
  %1037 = vmatprep.subr.mxu0 0.0
  %1038 = vmatpush2.msra.mxu0 0.0
  %1039 = vmatprep.subr.mxu0 0.0
  %1040 = vmatpush2.msra.mxu0 0.0
  %1041 = vmatprep.subr.mxu0 0.0
  %1042 = vmatpush2.msra.mxu0 0.0
  %1043 = vmatprep.subr.mxu0 0.0
  %1044 = vmatpush2.msra.mxu0 0.0
  %1045 = vmatprep.subr.mxu0 0.0
  %1046 = vmatpush2.msra.mxu0 0.0
  %1047 = vmatprep.subr.mxu0 0.0
  %1048 = vmatpush2.msra.mxu0 0.0
  %1049 = vmatprep.mubr.f32.mxu0 0.0
  %1050 = vmatmul.mubr.f32.gmra.mxu0 %v952
  %v1051 = vpop.f32.mrf.mxu0
  %v1052 = vadd.f32 %v983, %v1051
  %v1053 = vpop.f32.mrf.mxu0
  %1054 = vmatprep.mubr.f32.mxu0 0.0
  %1055 = vmatmul.mubr.f32.gmra.mxu0 %v953
  %v1056 = vpop.f32.mrf.mxu0
  %v1057 = vadd.f32 %v983, %v1056
  %v1058 = vpop.f32.mrf.mxu0
  %1059 = vmatprep.mubr.f32.mxu0 0.0
  %1060 = vmatmul.mubr.f32.gmra.mxu0 %v954
  %v1061 = vpop.f32.mrf.mxu0
  %v1062 = vadd.f32 %v983, %v1061
  %v1063 = vpop.f32.mrf.mxu0
  %1064 = vmatprep.mubr.f32.mxu0 0.0
  %1065 = vmatmul.mubr.f32.gmra.mxu0 %v955
  %v1066 = vpop.f32.mrf.mxu0
  %v1067 = vadd.f32 %v983, %v1066
  %v1068 = vpop.f32.mrf.mxu0
  %1069 = vmatprep.mubr.f32.mxu0 0.0
  %1070 = vmatmul.mubr.f32.gmra.mxu0 %v956
  %v1071 = vpop.f32.mrf.mxu0
  %v1072 = vadd.f32 %v983, %v1071
  %v1073 = vpop.f32.mrf.mxu0
  %1074 = vmatprep.mubr.f32.mxu0 0.0
  %1075 = vmatmul.mubr.f32.gmra.mxu0 %v957
  %v1076 = vpop.f32.mrf.mxu0
  %v1077 = vadd.f32 %v983, %v1076
  %v1078 = vpop.f32.mrf.mxu0
  %1079 = vmatprep.mubr.f32.mxu0 0.0
  %1080 = vmatmul.mubr.f32.gmra.mxu0 %v958
  %v1081 = vpop.f32.mrf.mxu0
  %v1082 = vadd.f32 %v983, %v1081
  %v1083 = vpop.f32.mrf.mxu0
  %1084 = vmatprep.mubr.f32.mxu0 0.0
  %1085 = vmatmul.mubr.f32.gmra.mxu0 %v959
  %v1086 = vpop.f32.mrf.mxu0
  %v1087 = vadd.f32 %v983, %v1086
  %v1088 = vpop.f32.mrf.mxu0
  %1089 = vdwg.mxu0
  %s1090 = scalar_lea.vmem %s4, 128
  %v1091 = vld [vmem:[%s1090] sm:$0xff]
  %v1092 = vld [vmem:[%s1090 + $0x8] sm:$0xff]
  %v1093 = vld [vmem:[%s1090 + $0x10] sm:$0xff]
  %v1094 = vld [vmem:[%s1090 + $0x18] sm:$0xff]
  %v1095 = vld [vmem:[%s1090 + $0x20] sm:$0xff]
  %v1096 = vld [vmem:[%s1090 + $0x28] sm:$0xff]
  %v1097 = vld [vmem:[%s1090 + $0x30] sm:$0xff]
  %v1098 = vld [vmem:[%s1090 + $0x38] sm:$0xff]
  %v1099 = vld [vmem:[%s1090 + $0x40] sm:$0xff]
  %v1100 = vld [vmem:[%s1090 + $0x48] sm:$0xff]
  %v1101 = vld [vmem:[%s1090 + $0x50] sm:$0xff]
  %v1102 = vld [vmem:[%s1090 + $0x58] sm:$0xff]
  %v1103 = vld [vmem:[%s1090 + $0x60] sm:$0xff]
  %v1104 = vld [vmem:[%s1090 + $0x68] sm:$0xff]
  %v1105 = vld [vmem:[%s1090 + $0x70] sm:$0xff]
  %v1106 = vld [vmem:[%s1090 + $0x78] sm:$0xff]
  %s1107 = scalar_lea.vmem %s2, 8
  %v1108 = vld [vmem:[%s1107] sm:$0xff]
  %1109 = vmatprep.subr.mxu0 0.0
  %1110 = vmatpush1.msra.mxu0 %v1106
  %1111 = vmatprep.subr.mxu0 0.0
  %1112 = vmatpush1.msra.mxu0 %v1105
  %1113 = vmatprep.subr.mxu0 0.0
  %1114 = vmatpush1.msra.mxu0 %v1104
  %1115 = vmatprep.subr.mxu0 0.0
  %1116 = vmatpush1.msra.mxu0 %v1103
  %1117 = vmatprep.subr.mxu0 0.0
  %1118 = vmatpush1.msra.mxu0 %v1102
  %1119 = vmatprep.subr.mxu0 0.0
  %1120 = vmatpush1.msra.mxu0 %v1101
  %1121 = vmatprep.subr.mxu0 0.0
  %1122 = vmatpush1.msra.mxu0 %v1100
  %1123 = vmatprep.subr.mxu0 0.0
  %1124 = vmatpush1.msra.mxu0 %v1099
  %1125 = vmatprep.subr.mxu0 0.0
  %1126 = vmatpush1.msra.mxu0 %v1098
  %1127 = vmatprep.subr.mxu0 0.0
  %1128 = vmatpush1.msra.mxu0 %v1097
  %1129 = vmatprep.subr.mxu0 0.0
  %1130 = vmatpush1.msra.mxu0 %v1096
  %1131 = vmatprep.subr.mxu0 0.0
  %1132 = vmatpush1.msra.mxu0 %v1095
  %1133 = vmatprep.subr.mxu0 0.0
  %1134 = vmatpush1.msra.mxu0 %v1094
  %1135 = vmatprep.subr.mxu0 0.0
  %1136 = vmatpush1.msra.mxu0 %v1093
  %1137 = vmatprep.subr.mxu0 0.0
  %1138 = vmatpush1.msra.mxu0 %v1092
  %1139 = vmatprep.subr.mxu0 0.0
  %1140 = vmatpush1.msra.mxu0 %v1091
  %1141 = vmatprep.subr.mxu0 0.0
  %1142 = vmatpush2.msra.mxu0 0.0
  %1143 = vmatprep.subr.mxu0 0.0
  %1144 = vmatpush2.msra.mxu0 0.0
  %1145 = vmatprep.subr.mxu0 0.0
  %1146 = vmatpush2.msra.mxu0 0.0
  %1147 = vmatprep.subr.mxu0 0.0
  %1148 = vmatpush2.msra.mxu0 0.0
  %1149 = vmatprep.subr.mxu0 0.0
  %1150 = vmatpush2.msra.mxu0 0.0
  %1151 = vmatprep.subr.mxu0 0.0
  %1152 = vmatpush2.msra.mxu0 0.0
  %1153 = vmatprep.subr.mxu0 0.0
  %1154 = vmatpush2.msra.mxu0 0.0
  %1155 = vmatprep.subr.mxu0 0.0
  %1156 = vmatpush2.msra.mxu0 0.0
  %1157 = vmatprep.subr.mxu0 0.0
  %1158 = vmatpush2.msra.mxu0 0.0
  %1159 = vmatprep.subr.mxu0 0.0
  %1160 = vmatpush2.msra.mxu0 0.0
  %1161 = vmatprep.subr.mxu0 0.0
  %1162 = vmatpush2.msra.mxu0 0.0
  %1163 = vmatprep.subr.mxu0 0.0
  %1164 = vmatpush2.msra.mxu0 0.0
  %1165 = vmatprep.subr.mxu0 0.0
  %1166 = vmatpush2.msra.mxu0 0.0
  %1167 = vmatprep.subr.mxu0 0.0
  %1168 = vmatpush2.msra.mxu0 0.0
  %1169 = vmatprep.subr.mxu0 0.0
  %1170 = vmatpush2.msra.mxu0 0.0
  %1171 = vmatprep.subr.mxu0 0.0
  %1172 = vmatpush2.msra.mxu0 0.0
  %1173 = vmatprep.mubr.f32.mxu0 0.0
  %1174 = vmatmul.mubr.f32.gmra.mxu0 %v1108
  %v1175 = vpop.f32.mrf.mxu0
  %v1176 = vadd.f32 0.0, %v1175
  %v1177 = vpop.f32.mrf.mxu0
  %1178 = vdwg.mxu0
  %v1179 = vadd.f32 %v1052, %v1176
  %v1180 = vtanh.pop %v1179
  %1181 = vmatprep.subr.mxu0 0.0
  %1182 = vmatpush1.msra.mxu0 %v1106
  %1183 = vmatprep.subr.mxu0 0.0
  %1184 = vmatpush1.msra.mxu0 %v1105
  %1185 = vmatprep.subr.mxu0 0.0
  %1186 = vmatpush1.msra.mxu0 %v1104
  %1187 = vmatprep.subr.mxu0 0.0
  %1188 = vmatpush1.msra.mxu0 %v1103
  %1189 = vmatprep.subr.mxu0 0.0
  %1190 = vmatpush1.msra.mxu0 %v1102
  %1191 = vmatprep.subr.mxu0 0.0
  %1192 = vmatpush1.msra.mxu0 %v1101
  %1193 = vmatprep.subr.mxu0 0.0
  %1194 = vmatpush1.msra.mxu0 %v1100
  %1195 = vmatprep.subr.mxu0 0.0
  %1196 = vmatpush1.msra.mxu0 %v1099
  %1197 = vmatprep.subr.mxu0 0.0
  %1198 = vmatpush1.msra.mxu0 %v1098
  %1199 = vmatprep.subr.mxu0 0.0
  %1200 = vmatpush1.msra.mxu0 %v1097
  %1201 = vmatprep.subr.mxu0 0.0
  %1202 = vmatpush1.msra.mxu0 %v1096
  %1203 = vmatprep.subr.mxu0 0.0
  %1204 = vmatpush1.msra.mxu0 %v1095
  %1205 = vmatprep.subr.mxu0 0.0
  %1206 = vmatpush1.msra.mxu0 %v1094
  %1207 = vmatprep.subr.mxu0 0.0
  %1208 = vmatpush1.msra.mxu0 %v1093
  %1209 = vmatprep.subr.mxu0 0.0
  %1210 = vmatpush1.msra.mxu0 %v1092
  %1211 = vmatprep.subr.mxu0 0.0
  %1212 = vmatpush1.msra.mxu0 %v1091
  %1213 = vmatprep.subr.mxu0 0.0
  %1214 = vmatpush2.msra.mxu0 0.0
  %1215 = vmatprep.subr.mxu0 0.0
  %1216 = vmatpush2.msra.mxu0 0.0
  %1217 = vmatprep.subr.mxu0 0.0
  %1218 = vmatpush2.msra.mxu0 0.0
  %1219 = vmatprep.subr.mxu0 0.0
  %1220 = vmatpush2.msra.mxu0 0.0
  %1221 = vmatprep.subr.mxu0 0.0
  %1222 = vmatpush2.msra.mxu0 0.0
  %1223 = vmatprep.subr.mxu0 0.0
  %1224 = vmatpush2.msra.mxu0 0.0
  %1225 = vmatprep.subr.mxu0 0.0
  %1226 = vmatpush2.msra.mxu0 0.0
  %1227 = vmatprep.subr.mxu0 0.0
  %1228 = vmatpush2.msra.mxu0 0.0
  %1229 = vmatprep.subr.mxu0 0.0
  %1230 = vmatpush2.msra.mxu0 0.0
  %1231 = vmatprep.subr.mxu0 0.0
  %1232 = vmatpush2.msra.mxu0 0.0
  %1233 = vmatprep.subr.mxu0 0.0
  %1234 = vmatpush2.msra.mxu0 0.0
  %1235 = vmatprep.subr.mxu0 0.0
  %1236 = vmatpush2.msra.mxu0 0.0
  %1237 = vmatprep.subr.mxu0 0.0
  %1238 = vmatpush2.msra.mxu0 0.0
  %1239 = vmatprep.subr.mxu0 0.0
  %1240 = vmatpush2.msra.mxu0 0.0
  %1241 = vmatprep.subr.mxu0 0.0
  %1242 = vmatpush2.msra.mxu0 0.0
  %1243 = vmatprep.subr.mxu0 0.0
  %1244 = vmatpush2.msra.mxu0 0.0
  %1245 = vmatprep.mubr.f32.mxu0 0.0
  %1246 = vmatmul.mubr.f32.gmra.mxu0 %v1180
  %v1247 = vpop.f32.mrf.mxu0
  %v1248 = vadd.f32 0.0, %v1247
  %v1249 = vpop.f32.mrf.mxu0
  %1250 = vdwg.mxu0
  %v1251 = vadd.f32 %v1057, %v1248
  %v1252 = vtanh.pop %v1251
  %1253 = vmatprep.subr.mxu0 0.0
  %1254 = vmatpush1.msra.mxu0 %v1106
  %1255 = vmatprep.subr.mxu0 0.0
  %1256 = vmatpush1.msra.mxu0 %v1105
  %1257 = vmatprep.subr.mxu0 0.0
  %1258 = vmatpush1.msra.mxu0 %v1104
  %1259 = vmatprep.subr.mxu0 0.0
  %1260 = vmatpush1.msra.mxu0 %v1103
  %1261 = vmatprep.subr.mxu0 0.0
  %1262 = vmatpush1.msra.mxu0 %v1102
  %1263 = vmatprep.subr.mxu0 0.0
  %1264 = vmatpush1.msra.mxu0 %v1101
  %1265 = vmatprep.subr.mxu0 0.0
  %1266 = vmatpush1.msra.mxu0 %v1100
  %1267 = vmatprep.subr.mxu0 0.0
  %1268 = vmatpush1.msra.mxu0 %v1099
  %1269 = vmatprep.subr.mxu0 0.0
  %1270 = vmatpush1.msra.mxu0 %v1098
  %1271 = vmatprep.subr.mxu0 0.0
  %1272 = vmatpush1.msra.mxu0 %v1097
  %1273 = vmatprep.subr.mxu0 0.0
  %1274 = vmatpush1.msra.mxu0 %v1096
  %1275 = vmatprep.subr.mxu0 0.0
  %1276 = vmatpush1.msra.mxu0 %v1095
  %1277 = vmatprep.subr.mxu0 0.0
  %1278 = vmatpush1.msra.mxu0 %v1094
  %1279 = vmatprep.subr.mxu0 0.0
  %1280 = vmatpush1.msra.mxu0 %v1093
  %1281 = vmatprep.subr.mxu0 0.0
  %1282 = vmatpush1.msra.mxu0 %v1092
  %1283 = vmatprep.subr.mxu0 0.0
  %1284 = vmatpush1.msra.mxu0 %v1091
  %1285 = vmatprep.subr.mxu0 0.0
  %1286 = vmatpush2.msra.mxu0 0.0
  %1287 = vmatprep.subr.mxu0 0.0
  %1288 = vmatpush2.msra.mxu0 0.0
  %1289 = vmatprep.subr.mxu0 0.0
  %1290 = vmatpush2.msra.mxu0 0.0
  %1291 = vmatprep.subr.mxu0 0.0
  %1292 = vmatpush2.msra.mxu0 0.0
  %1293 = vmatprep.subr.mxu0 0.0
  %1294 = vmatpush2.msra.mxu0 0.0
  %1295 = vmatprep.subr.mxu0 0.0
  %1296 = vmatpush2.msra.mxu0 0.0
  %1297 = vmatprep.subr.mxu0 0.0
  %1298 = vmatpush2.msra.mxu0 0.0
  %1299 = vmatprep.subr.mxu0 0.0
  %1300 = vmatpush2.msra.mxu0 0.0
  %1301 = vmatprep.subr.mxu0 0.0
  %1302 = vmatpush2.msra.mxu0 0.0
  %1303 = vmatprep.subr.mxu0 0.0
  %1304 = vmatpush2.msra.mxu0 0.0
  %1305 = vmatprep.subr.mxu0 0.0
  %1306 = vmatpush2.msra.mxu0 0.0
  %1307 = vmatprep.subr.mxu0 0.0
  %1308 = vmatpush2.msra.mxu0 0.0
  %1309 = vmatprep.subr.mxu0 0.0
  %1310 = vmatpush2.msra.mxu0 0.0
  %1311 = vmatprep.subr.mxu0 0.0
  %1312 = vmatpush2.msra.mxu0 0.0
  %1313 = vmatprep.subr.mxu0 0.0
  %1314 = vmatpush2.msra.mxu0 0.0
  %1315 = vmatprep.subr.mxu0 0.0
  %1316 = vmatpush2.msra.mxu0 0.0
  %1317 = vmatprep.mubr.f32.mxu0 0.0
  %1318 = vmatmul.mubr.f32.gmra.mxu0 %v1252
  %v1319 = vpop.f32.mrf.mxu0
  %v1320 = vadd.f32 0.0, %v1319
  %v1321 = vpop.f32.mrf.mxu0
  %1322 = vdwg.mxu0
  %v1323 = vadd.f32 %v1062, %v1320
  %v1324 = vtanh.pop %v1323
  %1325 = vmatprep.subr.mxu0 0.0
  %1326 = vmatpush1.msra.mxu0 %v1106
  %1327 = vmatprep.subr.mxu0 0.0
  %1328 = vmatpush1.msra.mxu0 %v1105
  %1329 = vmatprep.subr.mxu0 0.0
  %1330 = vmatpush1.msra.mxu0 %v1104
  %1331 = vmatprep.subr.mxu0 0.0
  %1332 = vmatpush1.msra.mxu0 %v1103
  %1333 = vmatprep.subr.mxu0 0.0
  %1334 = vmatpush1.msra.mxu0 %v1102
  %1335 = vmatprep.subr.mxu0 0.0
  %1336 = vmatpush1.msra.mxu0 %v1101
  %1337 = vmatprep.subr.mxu0 0.0
  %1338 = vmatpush1.msra.mxu0 %v1100
  %1339 = vmatprep.subr.mxu0 0.0
  %1340 = vmatpush1.msra.mxu0 %v1099
  %1341 = vmatprep.subr.mxu0 0.0
  %1342 = vmatpush1.msra.mxu0 %v1098
  %1343 = vmatprep.subr.mxu0 0.0
  %1344 = vmatpush1.msra.mxu0 %v1097
  %1345 = vmatprep.subr.mxu0 0.0
  %1346 = vmatpush1.msra.mxu0 %v1096
  %1347 = vmatprep.subr.mxu0 0.0
  %1348 = vmatpush1.msra.mxu0 %v1095
  %1349 = vmatprep.subr.mxu0 0.0
  %1350 = vmatpush1.msra.mxu0 %v1094
  %1351 = vmatprep.subr.mxu0 0.0
  %1352 = vmatpush1.msra.mxu0 %v1093
  %1353 = vmatprep.subr.mxu0 0.0
  %1354 = vmatpush1.msra.mxu0 %v1092
  %1355 = vmatprep.subr.mxu0 0.0
  %1356 = vmatpush1.msra.mxu0 %v1091
  %1357 = vmatprep.subr.mxu0 0.0
  %1358 = vmatpush2.msra.mxu0 0.0
  %1359 = vmatprep.subr.mxu0 0.0
  %1360 = vmatpush2.msra.mxu0 0.0
  %1361 = vmatprep.subr.mxu0 0.0
  %1362 = vmatpush2.msra.mxu0 0.0
  %1363 = vmatprep.subr.mxu0 0.0
  %1364 = vmatpush2.msra.mxu0 0.0
  %1365 = vmatprep.subr.mxu0 0.0
  %1366 = vmatpush2.msra.mxu0 0.0
  %1367 = vmatprep.subr.mxu0 0.0
  %1368 = vmatpush2.msra.mxu0 0.0
  %1369 = vmatprep.subr.mxu0 0.0
  %1370 = vmatpush2.msra.mxu0 0.0
  %1371 = vmatprep.subr.mxu0 0.0
  %1372 = vmatpush2.msra.mxu0 0.0
  %1373 = vmatprep.subr.mxu0 0.0
  %1374 = vmatpush2.msra.mxu0 0.0
  %1375 = vmatprep.subr.mxu0 0.0
  %1376 = vmatpush2.msra.mxu0 0.0
  %1377 = vmatprep.subr.mxu0 0.0
  %1378 = vmatpush2.msra.mxu0 0.0
  %1379 = vmatprep.subr.mxu0 0.0
  %1380 = vmatpush2.msra.mxu0 0.0
  %1381 = vmatprep.subr.mxu0 0.0
  %1382 = vmatpush2.msra.mxu0 0.0
  %1383 = vmatprep.subr.mxu0 0.0
  %1384 = vmatpush2.msra.mxu0 0.0
  %1385 = vmatprep.subr.mxu0 0.0
  %1386 = vmatpush2.msra.mxu0 0.0
  %1387 = vmatprep.subr.mxu0 0.0
  %1388 = vmatpush2.msra.mxu0 0.0
  %1389 = vmatprep.mubr.f32.mxu0 0.0
  %1390 = vmatmul.mubr.f32.gmra.mxu0 %v1324
  %v1391 = vpop.f32.mrf.mxu0
  %v1392 = vadd.f32 0.0, %v1391
  %v1393 = vpop.f32.mrf.mxu0
  %1394 = vdwg.mxu0
  %v1395 = vadd.f32 %v1067, %v1392
  %v1396 = vtanh.pop %v1395
  %1397 = vmatprep.subr.mxu0 0.0
  %1398 = vmatpush1.msra.mxu0 %v1106
  %1399 = vmatprep.subr.mxu0 0.0
  %1400 = vmatpush1.msra.mxu0 %v1105
  %1401 = vmatprep.subr.mxu0 0.0
  %1402 = vmatpush1.msra.mxu0 %v1104
  %1403 = vmatprep.subr.mxu0 0.0
  %1404 = vmatpush1.msra.mxu0 %v1103
  %1405 = vmatprep.subr.mxu0 0.0
  %1406 = vmatpush1.msra.mxu0 %v1102
  %1407 = vmatprep.subr.mxu0 0.0
  %1408 = vmatpush1.msra.mxu0 %v1101
  %1409 = vmatprep.subr.mxu0 0.0
  %1410 = vmatpush1.msra.mxu0 %v1100
  %1411 = vmatprep.subr.mxu0 0.0
  %1412 = vmatpush1.msra.mxu0 %v1099
  %1413 = vmatprep.subr.mxu0 0.0
  %1414 = vmatpush1.msra.mxu0 %v1098
  %1415 = vmatprep.subr.mxu0 0.0
  %1416 = vmatpush1.msra.mxu0 %v1097
  %1417 = vmatprep.subr.mxu0 0.0
  %1418 = vmatpush1.msra.mxu0 %v1096
  %1419 = vmatprep.subr.mxu0 0.0
  %1420 = vmatpush1.msra.mxu0 %v1095
  %1421 = vmatprep.subr.mxu0 0.0
  %1422 = vmatpush1.msra.mxu0 %v1094
  %1423 = vmatprep.subr.mxu0 0.0
  %1424 = vmatpush1.msra.mxu0 %v1093
  %1425 = vmatprep.subr.mxu0 0.0
  %1426 = vmatpush1.msra.mxu0 %v1092
  %1427 = vmatprep.subr.mxu0 0.0
  %1428 = vmatpush1.msra.mxu0 %v1091
  %1429 = vmatprep.subr.mxu0 0.0
  %1430 = vmatpush2.msra.mxu0 0.0
  %1431 = vmatprep.subr.mxu0 0.0
  %1432 = vmatpush2.msra.mxu0 0.0
  %1433 = vmatprep.subr.mxu0 0.0
  %1434 = vmatpush2.msra.mxu0 0.0
  %1435 = vmatprep.subr.mxu0 0.0
  %1436 = vmatpush2.msra.mxu0 0.0
  %1437 = vmatprep.subr.mxu0 0.0
  %1438 = vmatpush2.msra.mxu0 0.0
  %1439 = vmatprep.subr.mxu0 0.0
  %1440 = vmatpush2.msra.mxu0 0.0
  %1441 = vmatprep.subr.mxu0 0.0
  %1442 = vmatpush2.msra.mxu0 0.0
  %1443 = vmatprep.subr.mxu0 0.0
  %1444 = vmatpush2.msra.mxu0 0.0
  %1445 = vmatprep.subr.mxu0 0.0
  %1446 = vmatpush2.msra.mxu0 0.0
  %1447 = vmatprep.subr.mxu0 0.0
  %1448 = vmatpush2.msra.mxu0 0.0
  %1449 = vmatprep.subr.mxu0 0.0
  %1450 = vmatpush2.msra.mxu0 0.0
  %1451 = vmatprep.subr.mxu0 0.0
  %1452 = vmatpush2.msra.mxu0 0.0
  %1453 = vmatprep.subr.mxu0 0.0
  %1454 = vmatpush2.msra.mxu0 0.0
  %1455 = vmatprep.subr.mxu0 0.0
  %1456 = vmatpush2.msra.mxu0 0.0
  %1457 = vmatprep.subr.mxu0 0.0
  %1458 = vmatpush2.msra.mxu0 0.0
  %1459 = vmatprep.subr.mxu0 0.0
  %1460 = vmatpush2.msra.mxu0 0.0
  %1461 = vmatprep.mubr.f32.mxu0 0.0
  %1462 = vmatmul.mubr.f32.gmra.mxu0 %v1396
  %v1463 = vpop.f32.mrf.mxu0
  %v1464 = vadd.f32 0.0, %v1463
  %v1465 = vpop.f32.mrf.mxu0
  %1466 = vdwg.mxu0
  %v1467 = vadd.f32 %v1072, %v1464
  %v1468 = vtanh.pop %v1467
  %1469 = vmatprep.subr.mxu0 0.0
  %1470 = vmatpush1.msra.mxu0 %v1106
  %1471 = vmatprep.subr.mxu0 0.0
  %1472 = vmatpush1.msra.mxu0 %v1105
  %1473 = vmatprep.subr.mxu0 0.0
  %1474 = vmatpush1.msra.mxu0 %v1104
  %1475 = vmatprep.subr.mxu0 0.0
  %1476 = vmatpush1.msra.mxu0 %v1103
  %1477 = vmatprep.subr.mxu0 0.0
  %1478 = vmatpush1.msra.mxu0 %v1102
  %1479 = vmatprep.subr.mxu0 0.0
  %1480 = vmatpush1.msra.mxu0 %v1101
  %1481 = vmatprep.subr.mxu0 0.0
  %1482 = vmatpush1.msra.mxu0 %v1100
  %1483 = vmatprep.subr.mxu0 0.0
  %1484 = vmatpush1.msra.mxu0 %v1099
  %1485 = vmatprep.subr.mxu0 0.0
  %1486 = vmatpush1.msra.mxu0 %v1098
  %1487 = vmatprep.subr.mxu0 0.0
  %1488 = vmatpush1.msra.mxu0 %v1097
  %1489 = vmatprep.subr.mxu0 0.0
  %1490 = vmatpush1.msra.mxu0 %v1096
  %1491 = vmatprep.subr.mxu0 0.0
  %1492 = vmatpush1.msra.mxu0 %v1095
  %1493 = vmatprep.subr.mxu0 0.0
  %1494 = vmatpush1.msra.mxu0 %v1094
  %1495 = vmatprep.subr.mxu0 0.0
  %1496 = vmatpush1.msra.mxu0 %v1093
  %1497 = vmatprep.subr.mxu0 0.0
  %1498 = vmatpush1.msra.mxu0 %v1092
  %1499 = vmatprep.subr.mxu0 0.0
  %1500 = vmatpush1.msra.mxu0 %v1091
  %1501 = vmatprep.subr.mxu0 0.0
  %1502 = vmatpush2.msra.mxu0 0.0
  %1503 = vmatprep.subr.mxu0 0.0
  %1504 = vmatpush2.msra.mxu0 0.0
  %1505 = vmatprep.subr.mxu0 0.0
  %1506 = vmatpush2.msra.mxu0 0.0
  %1507 = vmatprep.subr.mxu0 0.0
  %1508 = vmatpush2.msra.mxu0 0.0
  %1509 = vmatprep.subr.mxu0 0.0
  %1510 = vmatpush2.msra.mxu0 0.0
  %1511 = vmatprep.subr.mxu0 0.0
  %1512 = vmatpush2.msra.mxu0 0.0
  %1513 = vmatprep.subr.mxu0 0.0
  %1514 = vmatpush2.msra.mxu0 0.0
  %1515 = vmatprep.subr.mxu0 0.0
  %1516 = vmatpush2.msra.mxu0 0.0
  %1517 = vmatprep.subr.mxu0 0.0
  %1518 = vmatpush2.msra.mxu0 0.0
  %1519 = vmatprep.subr.mxu0 0.0
  %1520 = vmatpush2.msra.mxu0 0.0
  %1521 = vmatprep.subr.mxu0 0.0
  %1522 = vmatpush2.msra.mxu0 0.0
  %1523 = vmatprep.subr.mxu0 0.0
  %1524 = vmatpush2.msra.mxu0 0.0
  %1525 = vmatprep.subr.mxu0 0.0
  %1526 = vmatpush2.msra.mxu0 0.0
  %1527 = vmatprep.subr.mxu0 0.0
  %1528 = vmatpush2.msra.mxu0 0.0
  %1529 = vmatprep.subr.mxu0 0.0
  %1530 = vmatpush2.msra.mxu0 0.0
  %1531 = vmatprep.subr.mxu0 0.0
  %1532 = vmatpush2.msra.mxu0 0.0
  %1533 = vmatprep.mubr.f32.mxu0 0.0
  %1534 = vmatmul.mubr.f32.gmra.mxu0 %v1468
  %v1535 = vpop.f32.mrf.mxu0
  %v1536 = vadd.f32 0.0, %v1535
  %v1537 = vpop.f32.mrf.mxu0
  %1538 = vdwg.mxu0
  %v1539 = vadd.f32 %v1077, %v1536
  %v1540 = vtanh.pop %v1539
  %1541 = vmatprep.subr.mxu0 0.0
  %1542 = vmatpush1.msra.mxu0 %v1106
  %1543 = vmatprep.subr.mxu0 0.0
  %1544 = vmatpush1.msra.mxu0 %v1105
  %1545 = vmatprep.subr.mxu0 0.0
  %1546 = vmatpush1.msra.mxu0 %v1104
  %1547 = vmatprep.subr.mxu0 0.0
  %1548 = vmatpush1.msra.mxu0 %v1103
  %1549 = vmatprep.subr.mxu0 0.0
  %1550 = vmatpush1.msra.mxu0 %v1102
  %1551 = vmatprep.subr.mxu0 0.0
  %1552 = vmatpush1.msra.mxu0 %v1101
  %1553 = vmatprep.subr.mxu0 0.0
  %1554 = vmatpush1.msra.mxu0 %v1100
  %1555 = vmatprep.subr.mxu0 0.0
  %1556 = vmatpush1.msra.mxu0 %v1099
  %1557 = vmatprep.subr.mxu0 0.0
  %1558 = vmatpush1.msra.mxu0 %v1098
  %1559 = vmatprep.subr.mxu0 0.0
  %1560 = vmatpush1.msra.mxu0 %v1097
  %1561 = vmatprep.subr.mxu0 0.0
  %1562 = vmatpush1.msra.mxu0 %v1096
  %1563 = vmatprep.subr.mxu0 0.0
  %1564 = vmatpush1.msra.mxu0 %v1095
  %1565 = vmatprep.subr.mxu0 0.0
  %1566 = vmatpush1.msra.mxu0 %v1094
  %1567 = vmatprep.subr.mxu0 0.0
  %1568 = vmatpush1.msra.mxu0 %v1093
  %1569 = vmatprep.subr.mxu0 0.0
  %1570 = vmatpush1.msra.mxu0 %v1092
  %1571 = vmatprep.subr.mxu0 0.0
  %1572 = vmatpush1.msra.mxu0 %v1091
  %1573 = vmatprep.subr.mxu0 0.0
  %1574 = vmatpush2.msra.mxu0 0.0
  %1575 = vmatprep.subr.mxu0 0.0
  %1576 = vmatpush2.msra.mxu0 0.0
  %1577 = vmatprep.subr.mxu0 0.0
  %1578 = vmatpush2.msra.mxu0 0.0
  %1579 = vmatprep.subr.mxu0 0.0
  %1580 = vmatpush2.msra.mxu0 0.0
  %1581 = vmatprep.subr.mxu0 0.0
  %1582 = vmatpush2.msra.mxu0 0.0
  %1583 = vmatprep.subr.mxu0 0.0
  %1584 = vmatpush2.msra.mxu0 0.0
  %1585 = vmatprep.subr.mxu0 0.0
  %1586 = vmatpush2.msra.mxu0 0.0
  %1587 = vmatprep.subr.mxu0 0.0
  %1588 = vmatpush2.msra.mxu0 0.0
  %1589 = vmatprep.subr.mxu0 0.0
  %1590 = vmatpush2.msra.mxu0 0.0
  %1591 = vmatprep.subr.mxu0 0.0
  %1592 = vmatpush2.msra.mxu0 0.0
  %1593 = vmatprep.subr.mxu0 0.0
  %1594 = vmatpush2.msra.mxu0 0.0
  %1595 = vmatprep.subr.mxu0 0.0
  %1596 = vmatpush2.msra.mxu0 0.0
  %1597 = vmatprep.subr.mxu0 0.0
  %1598 = vmatpush2.msra.mxu0 0.0
  %1599 = vmatprep.subr.mxu0 0.0
  %1600 = vmatpush2.msra.mxu0 0.0
  %1601 = vmatprep.subr.mxu0 0.0
  %1602 = vmatpush2.msra.mxu0 0.0
  %1603 = vmatprep.subr.mxu0 0.0
  %1604 = vmatpush2.msra.mxu0 0.0
  %1605 = vmatprep.mubr.f32.mxu0 0.0
  %1606 = vmatmul.mubr.f32.gmra.mxu0 %v1540
  %v1607 = vpop.f32.mrf.mxu0
  %v1608 = vadd.f32 0.0, %v1607
  %v1609 = vpop.f32.mrf.mxu0
  %1610 = vdwg.mxu0
  %v1611 = vadd.f32 %v1082, %v1608
  %v1612 = vtanh.pop %v1611
  %1613 = vmatprep.subr.mxu0 0.0
  %1614 = vmatpush1.msra.mxu0 %v1106
  %1615 = vmatprep.subr.mxu0 0.0
  %1616 = vmatpush1.msra.mxu0 %v1105
  %1617 = vmatprep.subr.mxu0 0.0
  %1618 = vmatpush1.msra.mxu0 %v1104
  %1619 = vmatprep.subr.mxu0 0.0
  %1620 = vmatpush1.msra.mxu0 %v1103
  %1621 = vmatprep.subr.mxu0 0.0
  %1622 = vmatpush1.msra.mxu0 %v1102
  %1623 = vmatprep.subr.mxu0 0.0
  %1624 = vmatpush1.msra.mxu0 %v1101
  %1625 = vmatprep.subr.mxu0 0.0
  %1626 = vmatpush1.msra.mxu0 %v1100
  %1627 = vmatprep.subr.mxu0 0.0
  %1628 = vmatpush1.msra.mxu0 %v1099
  %1629 = vmatprep.subr.mxu0 0.0
  %1630 = vmatpush1.msra.mxu0 %v1098
  %1631 = vmatprep.subr.mxu0 0.0
  %1632 = vmatpush1.msra.mxu0 %v1097
  %1633 = vmatprep.subr.mxu0 0.0
  %1634 = vmatpush1.msra.mxu0 %v1096
  %1635 = vmatprep.subr.mxu0 0.0
  %1636 = vmatpush1.msra.mxu0 %v1095
  %1637 = vmatprep.subr.mxu0 0.0
  %1638 = vmatpush1.msra.mxu0 %v1094
  %1639 = vmatprep.subr.mxu0 0.0
  %1640 = vmatpush1.msra.mxu0 %v1093
  %1641 = vmatprep.subr.mxu0 0.0
  %1642 = vmatpush1.msra.mxu0 %v1092
  %1643 = vmatprep.subr.mxu0 0.0
  %1644 = vmatpush1.msra.mxu0 %v1091
  %1645 = vmatprep.subr.mxu0 0.0
  %1646 = vmatpush2.msra.mxu0 0.0
  %1647 = vmatprep.subr.mxu0 0.0
  %1648 = vmatpush2.msra.mxu0 0.0
  %1649 = vmatprep.subr.mxu0 0.0
  %1650 = vmatpush2.msra.mxu0 0.0
  %1651 = vmatprep.subr.mxu0 0.0
  %1652 = vmatpush2.msra.mxu0 0.0
  %1653 = vmatprep.subr.mxu0 0.0
  %1654 = vmatpush2.msra.mxu0 0.0
  %1655 = vmatprep.subr.mxu0 0.0
  %1656 = vmatpush2.msra.mxu0 0.0
  %1657 = vmatprep.subr.mxu0 0.0
  %1658 = vmatpush2.msra.mxu0 0.0
  %1659 = vmatprep.subr.mxu0 0.0
  %1660 = vmatpush2.msra.mxu0 0.0
  %1661 = vmatprep.subr.mxu0 0.0
  %1662 = vmatpush2.msra.mxu0 0.0
  %1663 = vmatprep.subr.mxu0 0.0
  %1664 = vmatpush2.msra.mxu0 0.0
  %1665 = vmatprep.subr.mxu0 0.0
  %1666 = vmatpush2.msra.mxu0 0.0
  %1667 = vmatprep.subr.mxu0 0.0
  %1668 = vmatpush2.msra.mxu0 0.0
  %1669 = vmatprep.subr.mxu0 0.0
  %1670 = vmatpush2.msra.mxu0 0.0
  %1671 = vmatprep.subr.mxu0 0.0
  %1672 = vmatpush2.msra.mxu0 0.0
  %1673 = vmatprep.subr.mxu0 0.0
  %1674 = vmatpush2.msra.mxu0 0.0
  %1675 = vmatprep.subr.mxu0 0.0
  %1676 = vmatpush2.msra.mxu0 0.0
  %1677 = vmatprep.mubr.f32.mxu0 0.0
  %1678 = vmatmul.mubr.f32.gmra.mxu0 %v1612
  %v1679 = vpop.f32.mrf.mxu0
  %v1680 = vadd.f32 0.0, %v1679
  %v1681 = vpop.f32.mrf.mxu0
  %1682 = vdwg.mxu0
  %v1683 = vadd.f32 %v1087, %v1680
  %v1684 = vtanh.pop %v1683
  %v1685 = vld [vmem:[%s6] sm:$0xff]
  %v1686 = vld [vmem:[%s6 + $0x8] sm:$0xff]
  %v1687 = vld [vmem:[%s6 + $0x10] sm:$0xff]
  %v1688 = vld [vmem:[%s6 + $0x18] sm:$0xff]
  %v1689 = vld [vmem:[%s6 + $0x20] sm:$0xff]
  %v1690 = vld [vmem:[%s6 + $0x28] sm:$0xff]
  %v1691 = vld [vmem:[%s6 + $0x30] sm:$0xff]
  %v1692 = vld [vmem:[%s6 + $0x38] sm:$0xff]
  %v1693 = vld [vmem:[%s6 + $0x40] sm:$0xff]
  %v1694 = vld [vmem:[%s6 + $0x48] sm:$0xff]
  %v1695 = vld [vmem:[%s6 + $0x50] sm:$0xff]
  %v1696 = vld [vmem:[%s6 + $0x58] sm:$0xff]
  %v1697 = vld [vmem:[%s6 + $0x60] sm:$0xff]
  %v1698 = vld [vmem:[%s6 + $0x68] sm:$0xff]
  %v1699 = vld [vmem:[%s6 + $0x70] sm:$0xff]
  %v1700 = vld [vmem:[%s6 + $0x78] sm:$0xff]
  %v1701 = vld [vmem:[%s7] sm:$0x1]
  %v1703 = vlaneseq
  %v1704 = vshrl.u32 %v1703, 7
  %v1705 = vsub.s32 0, %v1704
  %v1706 = vrot.slane %v1701, %v1705
  %1708 = vmatprep.subr.mxu0 0.0
  %1709 = vmatpush1.msra.mxu0 %v1700
  %1710 = vmatprep.subr.mxu0 0.0
  %1711 = vmatpush1.msra.mxu0 %v1699
  %1712 = vmatprep.subr.mxu0 0.0
  %1713 = vmatpush1.msra.mxu0 %v1698
  %1714 = vmatprep.subr.mxu0 0.0
  %1715 = vmatpush1.msra.mxu0 %v1697
  %1716 = vmatprep.subr.mxu0 0.0
  %1717 = vmatpush1.msra.mxu0 %v1696
  %1718 = vmatprep.subr.mxu0 0.0
  %1719 = vmatpush1.msra.mxu0 %v1695
  %1720 = vmatprep.subr.mxu0 0.0
  %1721 = vmatpush1.msra.mxu0 %v1694
  %1722 = vmatprep.subr.mxu0 0.0
  %1723 = vmatpush1.msra.mxu0 %v1693
  %1724 = vmatprep.subr.mxu0 0.0
  %1725 = vmatpush1.msra.mxu0 %v1692
  %1726 = vmatprep.subr.mxu0 0.0
  %1727 = vmatpush1.msra.mxu0 %v1691
  %1728 = vmatprep.subr.mxu0 0.0
  %1729 = vmatpush1.msra.mxu0 %v1690
  %1730 = vmatprep.subr.mxu0 0.0
  %1731 = vmatpush1.msra.mxu0 %v1689
  %1732 = vmatprep.subr.mxu0 0.0
  %1733 = vmatpush1.msra.mxu0 %v1688
  %1734 = vmatprep.subr.mxu0 0.0
  %1735 = vmatpush1.msra.mxu0 %v1687
  %1736 = vmatprep.subr.mxu0 0.0
  %1737 = vmatpush1.msra.mxu0 %v1686
  %1738 = vmatprep.subr.mxu0 0.0
  %1739 = vmatpush1.msra.mxu0 %v1685
  %1740 = vmatprep.subr.mxu0 0.0
  %1741 = vmatpush2.msra.mxu0 0.0
  %1742 = vmatprep.subr.mxu0 0.0
  %1743 = vmatpush2.msra.mxu0 0.0
  %1744 = vmatprep.subr.mxu0 0.0
  %1745 = vmatpush2.msra.mxu0 0.0
  %1746 = vmatprep.subr.mxu0 0.0
  %1747 = vmatpush2.msra.mxu0 0.0
  %1748 = vmatprep.subr.mxu0 0.0
  %1749 = vmatpush2.msra.mxu0 0.0
  %1750 = vmatprep.subr.mxu0 0.0
  %1751 = vmatpush2.msra.mxu0 0.0
  %1752 = vmatprep.subr.mxu0 0.0
  %1753 = vmatpush2.msra.mxu0 0.0
  %1754 = vmatprep.subr.mxu0 0.0
  %1755 = vmatpush2.msra.mxu0 0.0
  %1756 = vmatprep.subr.mxu0 0.0
  %1757 = vmatpush2.msra.mxu0 0.0
  %1758 = vmatprep.subr.mxu0 0.0
  %1759 = vmatpush2.msra.mxu0 0.0
  %1760 = vmatprep.subr.mxu0 0.0
  %1761 = vmatpush2.msra.mxu0 0.0
  %1762 = vmatprep.subr.mxu0 0.0
  %1763 = vmatpush2.msra.mxu0 0.0
  %1764 = vmatprep.subr.mxu0 0.0
  %1765 = vmatpush2.msra.mxu0 0.0
  %1766 = vmatprep.subr.mxu0 0.0
  %1767 = vmatpush2.msra.mxu0 0.0
  %1768 = vmatprep.subr.mxu0 0.0
  %1769 = vmatpush2.msra.mxu0 0.0
  %1770 = vmatprep.subr.mxu0 0.0
  %1771 = vmatpush2.msra.mxu0 0.0
  %1772 = vmatprep.mubr.f32.mxu0 0.0
  %1773 = vmatmul.mubr.f32.gmra.mxu0 %v1684
  %v1774 = vpop.f32.mrf.mxu0
  %v1775 = vadd.f32 %v1706, %v1774
  %v1776 = vpop.f32.mrf.mxu0
  %1777 = vdwg.mxu0
  %1778 = vst [vmem:[%s8] sm:$0xff] %v1775
  // Predicated region
  $region34: #{decoder_rnn_forward.1} parent=0 // pred_check
    _
  $region35: #{decoder_rnn_forward.1} parent=0 // pred_check_branch
    %1780 = sbr.rel (0) target = $region37
  $region36: #{decoder_rnn_forward.1} parent=0 // pred_region
    _
  $region37: #{decoder_rnn_forward.1} parent=0 // pred_fallthru
    _
  // Predicated region
  $region38: #{decoder_rnn_forward.1} parent=0 // pred_check
    _
  $region39: #{decoder_rnn_forward.1} parent=0 // pred_check_branch
    %1782 = sbr.rel (0) target = $region41
  $region40: #{decoder_rnn_forward.1} parent=0 // pred_region
    _
  $region41: #{decoder_rnn_forward.1} parent=0 // pred_fallthru
    _

</llo_original>
